<compile_context>
chip_gen: v7x
topology: tpu7x:2x2x1
jax: 0.10.0
libtpu: 0.0.40
codegen_flags: <defaults>
</compile_context>

<pallas_src>
import numpy as np
import jax
import jax.numpy as jnp
from jax.experimental import pallas as pl
from jax.experimental.pallas import tpu as pltpu


def lstm_kernel(x_ref,          # (T, B, I)
                wih0_ref,       # (I, 4H)   gate order [i, f, o, g]
                whh0_ref,       # (H, 4H)
                b0_ref,         # (1, 4H)
                w1_ref,         # (2H, 4H)  fused [W_ih1; W_hh1]
                b1_ref,         # (1, 4H)
                wfc_ref,        # (H, O)
                bfc_ref,        # (1, O)
                out_ref):       # (B, O)
    T, B, I = x_ref.shape
    H = whh0_ref.shape[0]

    # ---- Hoist all weight / bias loads (and bias broadcasts) out of the loop.
    whh0 = whh0_ref[...]                                   # (H, 4H)
    w1 = w1_ref[...]                                       # (2H, 4H)
    b0 = jnp.broadcast_to(b0_ref[...], (B, 4 * H))         # (B, 4H)
    b1 = jnp.broadcast_to(b1_ref[...], (B, 4 * H))         # (B, 4H)
    if I == 1:
        # (1, 4H) row, pre-broadcast along sublanes once.
        wih0_b = jnp.broadcast_to(wih0_ref[...], (B, 4 * H))
    else:
        wih0 = wih0_ref[...]

    def activations(gates):
        # gate order [i, f, o, g]: one wide sigmoid + one tanh per cell.
        sig = jax.nn.sigmoid(gates[:, :3 * H])
        g_g = jnp.tanh(gates[:, 3 * H:])
        return sig[:, :H], sig[:, H:2 * H], sig[:, 2 * H:3 * H], g_g

    zeros = jnp.zeros((B, H), jnp.float32)
    h0, c0, h1, c1 = zeros, zeros, zeros, zeros            # state in registers

    # Small static trip count -> fully unrolled; LLO can pipeline across steps.
    for t in range(T):
        x_t = x_ref[t]                                     # (B, I)

        # ---- layer 0
        if I == 1:
            inp0 = x_t * wih0_b                            # VPU broadcast-mul, no MXU
        else:
            inp0 = jnp.dot(x_t, wih0, preferred_element_type=jnp.float32)
        gates0 = inp0 + jnp.dot(h0, whh0,
                                preferred_element_type=jnp.float32) + b0
        i0, f0, o0, g0 = activations(gates0)
        c0 = f0 * c0 + i0 * g0
        h0 = o0 * jnp.tanh(c0)

        # ---- layer 1 (single fused matmul over [h0, h1])
        hin = jnp.concatenate([h0, h1], axis=1)            # (B, 2H)
        gates1 = jnp.dot(hin, w1,
                         preferred_element_type=jnp.float32) + b1
        i1, f1, o1, g1 = activations(gates1)
        c1 = f1 * c1 + i1 * g1
        h1 = o1 * jnp.tanh(c1)

    # ---- fc(hn[-1]); (B, O) written once -> masked store is negligible.
    out_ref[...] = (jnp.dot(h1, wfc_ref[...],
                            preferred_element_type=jnp.float32)
                    + bfc_ref[...])


def _reorder_gates(w, H):
    """Permute last dim from PyTorch gate order [i,f,g,o] to kernel order [i,f,o,g]."""
    return jnp.concatenate([w[..., :2 * H],
                            w[..., 3 * H:4 * H],
                            w[..., 2 * H:3 * H]], axis=-1)


def lstm_model_forward(x, params):
    """x: (B, T, I) float32 -> (B, O) float32."""
    B, T, I = x.shape
    H = params["whh0"].shape[0]
    O = params["wfc"].shape[1]

    x_tbi = jnp.transpose(x, (1, 0, 2)).astype(jnp.float32)     # (T, B, I)

    # One-time (outside the kernel) weight layout prep.
    wih0 = _reorder_gates(params["wih0"], H)                    # (I, 4H)
    whh0 = _reorder_gates(params["whh0"], H)                    # (H, 4H)
    b0 = _reorder_gates(params["b0"], H)                        # (1, 4H)
    w1 = jnp.concatenate([_reorder_gates(params["wih1"], H),
                          _reorder_gates(params["whh1"], H)],
                         axis=0)                                # (2H, 4H)
    b1 = _reorder_gates(params["b1"], H)                        # (1, 4H)

    # Single invocation, no grid: all operands are whole-array VMEM blocks.
    return pl.pallas_call(
        lstm_kernel,
        out_shape=jax.ShapeDtypeStruct((B, O), jnp.float32),
        compiler_params=pltpu.CompilerParams(vmem_limit_bytes=32 * 1024 * 1024),
    )(x_tbi, wih0, whh0, b0, w1, b1, params["wfc"], params["bfc"])


def init_params(key, input_size=1, hidden_size=32, output_size=1):
    """Deterministic init mimicking PyTorch's U(-1/sqrt(H), 1/sqrt(H)).

    Weights are stored input-major (in_dim, 4H) with PyTorch gate order
    [i, f, g, o]; biases are the combined b_ih + b_hh."""
    H, I, O = hidden_size, input_size, output_size
    k = 1.0 / np.sqrt(H)
    keys = jax.random.split(key, 10)
    u = lambda kk, shape: jax.random.uniform(kk, shape, jnp.float32, -k, k)
    return {
        "wih0": u(keys[0], (I, 4 * H)),
        "whh0": u(keys[1], (H, 4 * H)),
        "b0": u(keys[2], (1, 4 * H)) + u(keys[3], (1, 4 * H)),
        "wih1": u(keys[4], (H, 4 * H)),
        "whh1": u(keys[5], (H, 4 * H)),
        "b1": u(keys[6], (1, 4 * H)) + u(keys[7], (1, 4 * H)),
        "wfc": u(keys[8], (H, O)),
        "bfc": u(keys[9], (1, O)),
    }


def lstm_ref(x, params):
    """Pure-JAX reference (same math as PyTorch nn.LSTM + Linear)."""
    B, T, I = x.shape
    H = params["whh0"].shape[0]

    def cell(inp, h, c, wih, whh, b):
        g = inp @ wih + h @ whh + b
        i_, f_, gg, o_ = jnp.split(g, 4, axis=-1)
        c_new = jax.nn.sigmoid(f_) * c + jax.nn.sigmoid(i_) * jnp.tanh(gg)
        h_new = jax.nn.sigmoid(o_) * jnp.tanh(c_new)
        return h_new, c_new

    def step(carry, x_t):
        h0, c0, h1, c1 = carry
        h0, c0 = cell(x_t, h0, c0, params["wih0"], params["whh0"], params["b0"])
        h1, c1 = cell(h0, h1, c1, params["wih1"], params["whh1"], params["b1"])
        return (h0, c0, h1, c1), None

    z = jnp.zeros((B, H), jnp.float32)
    (h0, c0, h1, c1), _ = jax.lax.scan(step, (z, z, z, z),
                                       jnp.transpose(x, (1, 0, 2)))
    return h1 @ params["wfc"] + params["bfc"]


if __name__ == "__main__":
    key = jax.random.PRNGKey(0)
    pkey, xkey = jax.random.split(key)

    B, T, I, H, O = 4, 8, 1, 32, 1  # batch, seq, input_size, hidden, output
    params = init_params(pkey, input_size=I, hidden_size=H, output_size=O)
    x = jax.random.normal(xkey, (B, T, I), jnp.float32)

    out = jax.block_until_ready(lstm_model_forward(x, params))
    ref = jax.block_until_ready(lstm_ref(x, params))
    np.testing.assert_allclose(np.asarray(out), np.asarray(ref),
                               rtol=1e-5, atol=1e-5)
    print("KERNEL_OK")
</pallas_src>

<mosaic_0001>
module attributes {stable_mosaic.version = 11 : i64} {
  func.func @lstm_kernel(%arg0: memref<8x4x1xf32, #tpu.memory_space<vmem>>, %arg1: memref<1x128xf32, #tpu.memory_space<vmem>>, %arg2: memref<32x128xf32, #tpu.memory_space<vmem>>, %arg3: memref<1x128xf32, #tpu.memory_space<vmem>>, %arg4: memref<64x128xf32, #tpu.memory_space<vmem>>, %arg5: memref<1x128xf32, #tpu.memory_space<vmem>>, %arg6: memref<32x1xf32, #tpu.memory_space<vmem>>, %arg7: memref<1x1xf32, #tpu.memory_space<vmem>>, %arg8: memref<4x1xf32, #tpu.memory_space<vmem>>) attributes {dimension_semantics = [], scalar_prefetch = 0 : i64, scratch_operands = 0 : i64, tpu.core_type = #tpu.core_type<tc>} {
    %c0 = arith.constant 0 : index
    %c0_0 = arith.constant 0 : index
    %0 = vector.load %arg2[%c0, %c0_0] : memref<32x128xf32, #tpu.memory_space<vmem>>, vector<32x128xf32>
    %c0_1 = arith.constant 0 : index
    %c0_2 = arith.constant 0 : index
    %1 = vector.load %arg4[%c0_1, %c0_2] : memref<64x128xf32, #tpu.memory_space<vmem>>, vector<64x128xf32>
    %c0_3 = arith.constant 0 : index
    %c0_4 = arith.constant 0 : index
    %2 = vector.load %arg3[%c0_3, %c0_4] : memref<1x128xf32, #tpu.memory_space<vmem>>, vector<1x128xf32>
    %3 = vector.shape_cast %2 : vector<1x128xf32> to vector<1x128xf32>
    %4 = vector.broadcast %3 : vector<1x128xf32> to vector<4x128xf32>
    %c0_5 = arith.constant 0 : index
    %c0_6 = arith.constant 0 : index
    %5 = vector.load %arg5[%c0_5, %c0_6] : memref<1x128xf32, #tpu.memory_space<vmem>>, vector<1x128xf32>
    %6 = vector.shape_cast %5 : vector<1x128xf32> to vector<1x128xf32>
    %7 = vector.broadcast %6 : vector<1x128xf32> to vector<4x128xf32>
    %c0_7 = arith.constant 0 : index
    %c0_8 = arith.constant 0 : index
    %8 = vector.load %arg1[%c0_7, %c0_8] : memref<1x128xf32, #tpu.memory_space<vmem>>, vector<1x128xf32>
    %9 = vector.shape_cast %8 : vector<1x128xf32> to vector<1x128xf32>
    %10 = vector.broadcast %9 : vector<1x128xf32> to vector<4x128xf32>
    %cst = arith.constant 0.000000e+00 : f32
    %11 = vector.broadcast %cst : f32 to vector<4x32xf32>
    %c0_9 = arith.constant 0 : index
    %c0_10 = arith.constant 0 : index
    %c0_11 = arith.constant 0 : index
    %12 = vector.load %arg0[%c0_9, %c0_10, %c0_11] : memref<8x4x1xf32, #tpu.memory_space<vmem>>, vector<1x4x1xf32>
    %13 = vector.shape_cast %12 : vector<1x4x1xf32> to vector<4x1xf32>
    %14 = vector.broadcast %13 : vector<4x1xf32> to vector<4x128xf32>
    %15 = arith.mulf %14, %10 : vector<4x128xf32>
    %cst_12 = arith.constant dense<0.000000e+00> : vector<4x128xf32>
    %16 = tpu.matmul %11, %0, %cst_12 {dimension_numbers = #tpu.dot_dimension_numbers<[1], [0], [0], [1], [0, 0, 1, 1], [], []>} : vector<4x32xf32>, vector<32x128xf32>, vector<4x128xf32> -> vector<4x128xf32>
    %17 = arith.addf %15, %16 : vector<4x128xf32>
    %18 = arith.addf %17, %4 : vector<4x128xf32>
    %19 = vector.extract_strided_slice %18 {offsets = [0, 0], sizes = [4, 96], strides = [1, 1]} : vector<4x128xf32> to vector<4x96xf32>
    %20 = arith.negf %19 : vector<4x96xf32>
    %21 = math.exp %20 : vector<4x96xf32>
    %cst_13 = arith.constant 1.000000e+00 : f32
    %22 = vector.broadcast %cst_13 : f32 to vector<4x96xf32>
    %23 = arith.addf %22, %21 : vector<4x96xf32>
    %24 = arith.divf %22, %23 : vector<4x96xf32>
    %25 = vector.extract_strided_slice %18 {offsets = [0, 96], sizes = [4, 32], strides = [1, 1]} : vector<4x128xf32> to vector<4x32xf32>
    %26 = math.tanh %25 : vector<4x32xf32>
    %27 = vector.extract_strided_slice %24 {offsets = [0, 0], sizes = [4, 32], strides = [1, 1]} : vector<4x96xf32> to vector<4x32xf32>
    %28 = vector.extract_strided_slice %24 {offsets = [0, 32], sizes = [4, 32], strides = [1, 1]} : vector<4x96xf32> to vector<4x32xf32>
    %29 = vector.extract_strided_slice %24 {offsets = [0, 64], sizes = [4, 32], strides = [1, 1]} : vector<4x96xf32> to vector<4x32xf32>
    %30 = arith.mulf %28, %11 : vector<4x32xf32>
    %31 = arith.mulf %27, %26 : vector<4x32xf32>
    %32 = arith.addf %30, %31 : vector<4x32xf32>
    %33 = math.tanh %32 : vector<4x32xf32>
    %34 = arith.mulf %29, %33 : vector<4x32xf32>
    %35 = tpu.concatenate %34, %11 in 1 : vector<4x32xf32>, vector<4x32xf32> -> vector<4x64xf32>
    %cst_14 = arith.constant dense<0.000000e+00> : vector<4x128xf32>
    %36 = tpu.matmul %35, %1, %cst_14 {dimension_numbers = #tpu.dot_dimension_numbers<[1], [0], [0], [1], [0, 0, 1, 1], [], []>} : vector<4x64xf32>, vector<64x128xf32>, vector<4x128xf32> -> vector<4x128xf32>
    %37 = arith.addf %36, %7 : vector<4x128xf32>
    %38 = vector.extract_strided_slice %37 {offsets = [0, 0], sizes = [4, 96], strides = [1, 1]} : vector<4x128xf32> to vector<4x96xf32>
    %39 = arith.negf %38 : vector<4x96xf32>
    %40 = math.exp %39 : vector<4x96xf32>
    %cst_15 = arith.constant 1.000000e+00 : f32
    %41 = vector.broadcast %cst_15 : f32 to vector<4x96xf32>
    %42 = arith.addf %41, %40 : vector<4x96xf32>
    %43 = arith.divf %41, %42 : vector<4x96xf32>
    %44 = vector.extract_strided_slice %37 {offsets = [0, 96], sizes = [4, 32], strides = [1, 1]} : vector<4x128xf32> to vector<4x32xf32>
    %45 = math.tanh %44 : vector<4x32xf32>
    %46 = vector.extract_strided_slice %43 {offsets = [0, 0], sizes = [4, 32], strides = [1, 1]} : vector<4x96xf32> to vector<4x32xf32>
    %47 = vector.extract_strided_slice %43 {offsets = [0, 32], sizes = [4, 32], strides = [1, 1]} : vector<4x96xf32> to vector<4x32xf32>
    %48 = vector.extract_strided_slice %43 {offsets = [0, 64], sizes = [4, 32], strides = [1, 1]} : vector<4x96xf32> to vector<4x32xf32>
    %49 = arith.mulf %47, %11 : vector<4x32xf32>
    %50 = arith.mulf %46, %45 : vector<4x32xf32>
    %51 = arith.addf %49, %50 : vector<4x32xf32>
    %52 = math.tanh %51 : vector<4x32xf32>
    %53 = arith.mulf %48, %52 : vector<4x32xf32>
    %c1 = arith.constant 1 : index
    %c0_16 = arith.constant 0 : index
    %c0_17 = arith.constant 0 : index
    %54 = vector.load %arg0[%c1, %c0_16, %c0_17] : memref<8x4x1xf32, #tpu.memory_space<vmem>>, vector<1x4x1xf32>
    %55 = vector.shape_cast %54 : vector<1x4x1xf32> to vector<4x1xf32>
    %56 = vector.broadcast %55 : vector<4x1xf32> to vector<4x128xf32>
    %57 = arith.mulf %56, %10 : vector<4x128xf32>
    %cst_18 = arith.constant dense<0.000000e+00> : vector<4x128xf32>
    %58 = tpu.matmul %34, %0, %cst_18 {dimension_numbers = #tpu.dot_dimension_numbers<[1], [0], [0], [1], [0, 0, 1, 1], [], []>} : vector<4x32xf32>, vector<32x128xf32>, vector<4x128xf32> -> vector<4x128xf32>
    %59 = arith.addf %57, %58 : vector<4x128xf32>
    %60 = arith.addf %59, %4 : vector<4x128xf32>
    %61 = vector.extract_strided_slice %60 {offsets = [0, 0], sizes = [4, 96], strides = [1, 1]} : vector<4x128xf32> to vector<4x96xf32>
    %62 = arith.negf %61 : vector<4x96xf32>
    %63 = math.exp %62 : vector<4x96xf32>
    %cst_19 = arith.constant 1.000000e+00 : f32
    %64 = vector.broadcast %cst_19 : f32 to vector<4x96xf32>
    %65 = arith.addf %64, %63 : vector<4x96xf32>
    %66 = arith.divf %64, %65 : vector<4x96xf32>
    %67 = vector.extract_strided_slice %60 {offsets = [0, 96], sizes = [4, 32], strides = [1, 1]} : vector<4x128xf32> to vector<4x32xf32>
    %68 = math.tanh %67 : vector<4x32xf32>
    %69 = vector.extract_strided_slice %66 {offsets = [0, 0], sizes = [4, 32], strides = [1, 1]} : vector<4x96xf32> to vector<4x32xf32>
    %70 = vector.extract_strided_slice %66 {offsets = [0, 32], sizes = [4, 32], strides = [1, 1]} : vector<4x96xf32> to vector<4x32xf32>
    %71 = vector.extract_strided_slice %66 {offsets = [0, 64], sizes = [4, 32], strides = [1, 1]} : vector<4x96xf32> to vector<4x32xf32>
    %72 = arith.mulf %70, %32 : vector<4x32xf32>
    %73 = arith.mulf %69, %68 : vector<4x32xf32>
    %74 = arith.addf %72, %73 : vector<4x32xf32>
    %75 = math.tanh %74 : vector<4x32xf32>
    %76 = arith.mulf %71, %75 : vector<4x32xf32>
    %77 = tpu.concatenate %76, %53 in 1 : vector<4x32xf32>, vector<4x32xf32> -> vector<4x64xf32>
    %cst_20 = arith.constant dense<0.000000e+00> : vector<4x128xf32>
    %78 = tpu.matmul %77, %1, %cst_20 {dimension_numbers = #tpu.dot_dimension_numbers<[1], [0], [0], [1], [0, 0, 1, 1], [], []>} : vector<4x64xf32>, vector<64x128xf32>, vector<4x128xf32> -> vector<4x128xf32>
    %79 = arith.addf %78, %7 : vector<4x128xf32>
    %80 = vector.extract_strided_slice %79 {offsets = [0, 0], sizes = [4, 96], strides = [1, 1]} : vector<4x128xf32> to vector<4x96xf32>
    %81 = arith.negf %80 : vector<4x96xf32>
    %82 = math.exp %81 : vector<4x96xf32>
    %cst_21 = arith.constant 1.000000e+00 : f32
    %83 = vector.broadcast %cst_21 : f32 to vector<4x96xf32>
    %84 = arith.addf %83, %82 : vector<4x96xf32>
    %85 = arith.divf %83, %84 : vector<4x96xf32>
    %86 = vector.extract_strided_slice %79 {offsets = [0, 96], sizes = [4, 32], strides = [1, 1]} : vector<4x128xf32> to vector<4x32xf32>
    %87 = math.tanh %86 : vector<4x32xf32>
    %88 = vector.extract_strided_slice %85 {offsets = [0, 0], sizes = [4, 32], strides = [1, 1]} : vector<4x96xf32> to vector<4x32xf32>
    %89 = vector.extract_strided_slice %85 {offsets = [0, 32], sizes = [4, 32], strides = [1, 1]} : vector<4x96xf32> to vector<4x32xf32>
    %90 = vector.extract_strided_slice %85 {offsets = [0, 64], sizes = [4, 32], strides = [1, 1]} : vector<4x96xf32> to vector<4x32xf32>
    %91 = arith.mulf %89, %51 : vector<4x32xf32>
    %92 = arith.mulf %88, %87 : vector<4x32xf32>
    %93 = arith.addf %91, %92 : vector<4x32xf32>
    %94 = math.tanh %93 : vector<4x32xf32>
    %95 = arith.mulf %90, %94 : vector<4x32xf32>
    %c2 = arith.constant 2 : index
    %c0_22 = arith.constant 0 : index
    %c0_23 = arith.constant 0 : index
    %96 = vector.load %arg0[%c2, %c0_22, %c0_23] : memref<8x4x1xf32, #tpu.memory_space<vmem>>, vector<1x4x1xf32>
    %97 = vector.shape_cast %96 : vector<1x4x1xf32> to vector<4x1xf32>
    %98 = vector.broadcast %97 : vector<4x1xf32> to vector<4x128xf32>
    %99 = arith.mulf %98, %10 : vector<4x128xf32>
    %cst_24 = arith.constant dense<0.000000e+00> : vector<4x128xf32>
    %100 = tpu.matmul %76, %0, %cst_24 {dimension_numbers = #tpu.dot_dimension_numbers<[1], [0], [0], [1], [0, 0, 1, 1], [], []>} : vector<4x32xf32>, vector<32x128xf32>, vector<4x128xf32> -> vector<4x128xf32>
    %101 = arith.addf %99, %100 : vector<4x128xf32>
    %102 = arith.addf %101, %4 : vector<4x128xf32>
    %103 = vector.extract_strided_slice %102 {offsets = [0, 0], sizes = [4, 96], strides = [1, 1]} : vector<4x128xf32> to vector<4x96xf32>
    %104 = arith.negf %103 : vector<4x96xf32>
    %105 = math.exp %104 : vector<4x96xf32>
    %cst_25 = arith.constant 1.000000e+00 : f32
    %106 = vector.broadcast %cst_25 : f32 to vector<4x96xf32>
    %107 = arith.addf %106, %105 : vector<4x96xf32>
    %108 = arith.divf %106, %107 : vector<4x96xf32>
    %109 = vector.extract_strided_slice %102 {offsets = [0, 96], sizes = [4, 32], strides = [1, 1]} : vector<4x128xf32> to vector<4x32xf32>
    %110 = math.tanh %109 : vector<4x32xf32>
    %111 = vector.extract_strided_slice %108 {offsets = [0, 0], sizes = [4, 32], strides = [1, 1]} : vector<4x96xf32> to vector<4x32xf32>
    %112 = vector.extract_strided_slice %108 {offsets = [0, 32], sizes = [4, 32], strides = [1, 1]} : vector<4x96xf32> to vector<4x32xf32>
    %113 = vector.extract_strided_slice %108 {offsets = [0, 64], sizes = [4, 32], strides = [1, 1]} : vector<4x96xf32> to vector<4x32xf32>
    %114 = arith.mulf %112, %74 : vector<4x32xf32>
    %115 = arith.mulf %111, %110 : vector<4x32xf32>
    %116 = arith.addf %114, %115 : vector<4x32xf32>
    %117 = math.tanh %116 : vector<4x32xf32>
    %118 = arith.mulf %113, %117 : vector<4x32xf32>
    %119 = tpu.concatenate %118, %95 in 1 : vector<4x32xf32>, vector<4x32xf32> -> vector<4x64xf32>
    %cst_26 = arith.constant dense<0.000000e+00> : vector<4x128xf32>
    %120 = tpu.matmul %119, %1, %cst_26 {dimension_numbers = #tpu.dot_dimension_numbers<[1], [0], [0], [1], [0, 0, 1, 1], [], []>} : vector<4x64xf32>, vector<64x128xf32>, vector<4x128xf32> -> vector<4x128xf32>
    %121 = arith.addf %120, %7 : vector<4x128xf32>
    %122 = vector.extract_strided_slice %121 {offsets = [0, 0], sizes = [4, 96], strides = [1, 1]} : vector<4x128xf32> to vector<4x96xf32>
    %123 = arith.negf %122 : vector<4x96xf32>
    %124 = math.exp %123 : vector<4x96xf32>
    %cst_27 = arith.constant 1.000000e+00 : f32
    %125 = vector.broadcast %cst_27 : f32 to vector<4x96xf32>
    %126 = arith.addf %125, %124 : vector<4x96xf32>
    %127 = arith.divf %125, %126 : vector<4x96xf32>
    %128 = vector.extract_strided_slice %121 {offsets = [0, 96], sizes = [4, 32], strides = [1, 1]} : vector<4x128xf32> to vector<4x32xf32>
    %129 = math.tanh %128 : vector<4x32xf32>
    %130 = vector.extract_strided_slice %127 {offsets = [0, 0], sizes = [4, 32], strides = [1, 1]} : vector<4x96xf32> to vector<4x32xf32>
    %131 = vector.extract_strided_slice %127 {offsets = [0, 32], sizes = [4, 32], strides = [1, 1]} : vector<4x96xf32> to vector<4x32xf32>
    %132 = vector.extract_strided_slice %127 {offsets = [0, 64], sizes = [4, 32], strides = [1, 1]} : vector<4x96xf32> to vector<4x32xf32>
    %133 = arith.mulf %131, %93 : vector<4x32xf32>
    %134 = arith.mulf %130, %129 : vector<4x32xf32>
    %135 = arith.addf %133, %134 : vector<4x32xf32>
    %136 = math.tanh %135 : vector<4x32xf32>
    %137 = arith.mulf %132, %136 : vector<4x32xf32>
    %c3 = arith.constant 3 : index
    %c0_28 = arith.constant 0 : index
    %c0_29 = arith.constant 0 : index
    %138 = vector.load %arg0[%c3, %c0_28, %c0_29] : memref<8x4x1xf32, #tpu.memory_space<vmem>>, vector<1x4x1xf32>
    %139 = vector.shape_cast %138 : vector<1x4x1xf32> to vector<4x1xf32>
    %140 = vector.broadcast %139 : vector<4x1xf32> to vector<4x128xf32>
    %141 = arith.mulf %140, %10 : vector<4x128xf32>
    %cst_30 = arith.constant dense<0.000000e+00> : vector<4x128xf32>
    %142 = tpu.matmul %118, %0, %cst_30 {dimension_numbers = #tpu.dot_dimension_numbers<[1], [0], [0], [1], [0, 0, 1, 1], [], []>} : vector<4x32xf32>, vector<32x128xf32>, vector<4x128xf32> -> vector<4x128xf32>
    %143 = arith.addf %141, %142 : vector<4x128xf32>
    %144 = arith.addf %143, %4 : vector<4x128xf32>
    %145 = vector.extract_strided_slice %144 {offsets = [0, 0], sizes = [4, 96], strides = [1, 1]} : vector<4x128xf32> to vector<4x96xf32>
    %146 = arith.negf %145 : vector<4x96xf32>
    %147 = math.exp %146 : vector<4x96xf32>
    %cst_31 = arith.constant 1.000000e+00 : f32
    %148 = vector.broadcast %cst_31 : f32 to vector<4x96xf32>
    %149 = arith.addf %148, %147 : vector<4x96xf32>
    %150 = arith.divf %148, %149 : vector<4x96xf32>
    %151 = vector.extract_strided_slice %144 {offsets = [0, 96], sizes = [4, 32], strides = [1, 1]} : vector<4x128xf32> to vector<4x32xf32>
    %152 = math.tanh %151 : vector<4x32xf32>
    %153 = vector.extract_strided_slice %150 {offsets = [0, 0], sizes = [4, 32], strides = [1, 1]} : vector<4x96xf32> to vector<4x32xf32>
    %154 = vector.extract_strided_slice %150 {offsets = [0, 32], sizes = [4, 32], strides = [1, 1]} : vector<4x96xf32> to vector<4x32xf32>
    %155 = vector.extract_strided_slice %150 {offsets = [0, 64], sizes = [4, 32], strides = [1, 1]} : vector<4x96xf32> to vector<4x32xf32>
    %156 = arith.mulf %154, %116 : vector<4x32xf32>
    %157 = arith.mulf %153, %152 : vector<4x32xf32>
    %158 = arith.addf %156, %157 : vector<4x32xf32>
    %159 = math.tanh %158 : vector<4x32xf32>
    %160 = arith.mulf %155, %159 : vector<4x32xf32>
    %161 = tpu.concatenate %160, %137 in 1 : vector<4x32xf32>, vector<4x32xf32> -> vector<4x64xf32>
    %cst_32 = arith.constant dense<0.000000e+00> : vector<4x128xf32>
    %162 = tpu.matmul %161, %1, %cst_32 {dimension_numbers = #tpu.dot_dimension_numbers<[1], [0], [0], [1], [0, 0, 1, 1], [], []>} : vector<4x64xf32>, vector<64x128xf32>, vector<4x128xf32> -> vector<4x128xf32>
    %163 = arith.addf %162, %7 : vector<4x128xf32>
    %164 = vector.extract_strided_slice %163 {offsets = [0, 0], sizes = [4, 96], strides = [1, 1]} : vector<4x128xf32> to vector<4x96xf32>
    %165 = arith.negf %164 : vector<4x96xf32>
    %166 = math.exp %165 : vector<4x96xf32>
    %cst_33 = arith.constant 1.000000e+00 : f32
    %167 = vector.broadcast %cst_33 : f32 to vector<4x96xf32>
    %168 = arith.addf %167, %166 : vector<4x96xf32>
    %169 = arith.divf %167, %168 : vector<4x96xf32>
    %170 = vector.extract_strided_slice %163 {offsets = [0, 96], sizes = [4, 32], strides = [1, 1]} : vector<4x128xf32> to vector<4x32xf32>
    %171 = math.tanh %170 : vector<4x32xf32>
    %172 = vector.extract_strided_slice %169 {offsets = [0, 0], sizes = [4, 32], strides = [1, 1]} : vector<4x96xf32> to vector<4x32xf32>
    %173 = vector.extract_strided_slice %169 {offsets = [0, 32], sizes = [4, 32], strides = [1, 1]} : vector<4x96xf32> to vector<4x32xf32>
    %174 = vector.extract_strided_slice %169 {offsets = [0, 64], sizes = [4, 32], strides = [1, 1]} : vector<4x96xf32> to vector<4x32xf32>
    %175 = arith.mulf %173, %135 : vector<4x32xf32>
    %176 = arith.mulf %172, %171 : vector<4x32xf32>
    %177 = arith.addf %175, %176 : vector<4x32xf32>
    %178 = math.tanh %177 : vector<4x32xf32>
    %179 = arith.mulf %174, %178 : vector<4x32xf32>
    %c4 = arith.constant 4 : index
    %c0_34 = arith.constant 0 : index
    %c0_35 = arith.constant 0 : index
    %180 = vector.load %arg0[%c4, %c0_34, %c0_35] : memref<8x4x1xf32, #tpu.memory_space<vmem>>, vector<1x4x1xf32>
    %181 = vector.shape_cast %180 : vector<1x4x1xf32> to vector<4x1xf32>
    %182 = vector.broadcast %181 : vector<4x1xf32> to vector<4x128xf32>
    %183 = arith.mulf %182, %10 : vector<4x128xf32>
    %cst_36 = arith.constant dense<0.000000e+00> : vector<4x128xf32>
    %184 = tpu.matmul %160, %0, %cst_36 {dimension_numbers = #tpu.dot_dimension_numbers<[1], [0], [0], [1], [0, 0, 1, 1], [], []>} : vector<4x32xf32>, vector<32x128xf32>, vector<4x128xf32> -> vector<4x128xf32>
    %185 = arith.addf %183, %184 : vector<4x128xf32>
    %186 = arith.addf %185, %4 : vector<4x128xf32>
    %187 = vector.extract_strided_slice %186 {offsets = [0, 0], sizes = [4, 96], strides = [1, 1]} : vector<4x128xf32> to vector<4x96xf32>
    %188 = arith.negf %187 : vector<4x96xf32>
    %189 = math.exp %188 : vector<4x96xf32>
    %cst_37 = arith.constant 1.000000e+00 : f32
    %190 = vector.broadcast %cst_37 : f32 to vector<4x96xf32>
    %191 = arith.addf %190, %189 : vector<4x96xf32>
    %192 = arith.divf %190, %191 : vector<4x96xf32>
    %193 = vector.extract_strided_slice %186 {offsets = [0, 96], sizes = [4, 32], strides = [1, 1]} : vector<4x128xf32> to vector<4x32xf32>
    %194 = math.tanh %193 : vector<4x32xf32>
    %195 = vector.extract_strided_slice %192 {offsets = [0, 0], sizes = [4, 32], strides = [1, 1]} : vector<4x96xf32> to vector<4x32xf32>
    %196 = vector.extract_strided_slice %192 {offsets = [0, 32], sizes = [4, 32], strides = [1, 1]} : vector<4x96xf32> to vector<4x32xf32>
    %197 = vector.extract_strided_slice %192 {offsets = [0, 64], sizes = [4, 32], strides = [1, 1]} : vector<4x96xf32> to vector<4x32xf32>
    %198 = arith.mulf %196, %158 : vector<4x32xf32>
    %199 = arith.mulf %195, %194 : vector<4x32xf32>
    %200 = arith.addf %198, %199 : vector<4x32xf32>
    %201 = math.tanh %200 : vector<4x32xf32>
    %202 = arith.mulf %197, %201 : vector<4x32xf32>
    %203 = tpu.concatenate %202, %179 in 1 : vector<4x32xf32>, vector<4x32xf32> -> vector<4x64xf32>
    %cst_38 = arith.constant dense<0.000000e+00> : vector<4x128xf32>
    %204 = tpu.matmul %203, %1, %cst_38 {dimension_numbers = #tpu.dot_dimension_numbers<[1], [0], [0], [1], [0, 0, 1, 1], [], []>} : vector<4x64xf32>, vector<64x128xf32>, vector<4x128xf32> -> vector<4x128xf32>
    %205 = arith.addf %204, %7 : vector<4x128xf32>
    %206 = vector.extract_strided_slice %205 {offsets = [0, 0], sizes = [4, 96], strides = [1, 1]} : vector<4x128xf32> to vector<4x96xf32>
    %207 = arith.negf %206 : vector<4x96xf32>
    %208 = math.exp %207 : vector<4x96xf32>
    %cst_39 = arith.constant 1.000000e+00 : f32
    %209 = vector.broadcast %cst_39 : f32 to vector<4x96xf32>
    %210 = arith.addf %209, %208 : vector<4x96xf32>
    %211 = arith.divf %209, %210 : vector<4x96xf32>
    %212 = vector.extract_strided_slice %205 {offsets = [0, 96], sizes = [4, 32], strides = [1, 1]} : vector<4x128xf32> to vector<4x32xf32>
    %213 = math.tanh %212 : vector<4x32xf32>
    %214 = vector.extract_strided_slice %211 {offsets = [0, 0], sizes = [4, 32], strides = [1, 1]} : vector<4x96xf32> to vector<4x32xf32>
    %215 = vector.extract_strided_slice %211 {offsets = [0, 32], sizes = [4, 32], strides = [1, 1]} : vector<4x96xf32> to vector<4x32xf32>
    %216 = vector.extract_strided_slice %211 {offsets = [0, 64], sizes = [4, 32], strides = [1, 1]} : vector<4x96xf32> to vector<4x32xf32>
    %217 = arith.mulf %215, %177 : vector<4x32xf32>
    %218 = arith.mulf %214, %213 : vector<4x32xf32>
    %219 = arith.addf %217, %218 : vector<4x32xf32>
    %220 = math.tanh %219 : vector<4x32xf32>
    %221 = arith.mulf %216, %220 : vector<4x32xf32>
    %c5 = arith.constant 5 : index
    %c0_40 = arith.constant 0 : index
    %c0_41 = arith.constant 0 : index
    %222 = vector.load %arg0[%c5, %c0_40, %c0_41] : memref<8x4x1xf32, #tpu.memory_space<vmem>>, vector<1x4x1xf32>
    %223 = vector.shape_cast %222 : vector<1x4x1xf32> to vector<4x1xf32>
    %224 = vector.broadcast %223 : vector<4x1xf32> to vector<4x128xf32>
    %225 = arith.mulf %224, %10 : vector<4x128xf32>
    %cst_42 = arith.constant dense<0.000000e+00> : vector<4x128xf32>
    %226 = tpu.matmul %202, %0, %cst_42 {dimension_numbers = #tpu.dot_dimension_numbers<[1], [0], [0], [1], [0, 0, 1, 1], [], []>} : vector<4x32xf32>, vector<32x128xf32>, vector<4x128xf32> -> vector<4x128xf32>
    %227 = arith.addf %225, %226 : vector<4x128xf32>
    %228 = arith.addf %227, %4 : vector<4x128xf32>
    %229 = vector.extract_strided_slice %228 {offsets = [0, 0], sizes = [4, 96], strides = [1, 1]} : vector<4x128xf32> to vector<4x96xf32>
    %230 = arith.negf %229 : vector<4x96xf32>
    %231 = math.exp %230 : vector<4x96xf32>
    %cst_43 = arith.constant 1.000000e+00 : f32
    %232 = vector.broadcast %cst_43 : f32 to vector<4x96xf32>
    %233 = arith.addf %232, %231 : vector<4x96xf32>
    %234 = arith.divf %232, %233 : vector<4x96xf32>
    %235 = vector.extract_strided_slice %228 {offsets = [0, 96], sizes = [4, 32], strides = [1, 1]} : vector<4x128xf32> to vector<4x32xf32>
    %236 = math.tanh %235 : vector<4x32xf32>
    %237 = vector.extract_strided_slice %234 {offsets = [0, 0], sizes = [4, 32], strides = [1, 1]} : vector<4x96xf32> to vector<4x32xf32>
    %238 = vector.extract_strided_slice %234 {offsets = [0, 32], sizes = [4, 32], strides = [1, 1]} : vector<4x96xf32> to vector<4x32xf32>
    %239 = vector.extract_strided_slice %234 {offsets = [0, 64], sizes = [4, 32], strides = [1, 1]} : vector<4x96xf32> to vector<4x32xf32>
    %240 = arith.mulf %238, %200 : vector<4x32xf32>
    %241 = arith.mulf %237, %236 : vector<4x32xf32>
    %242 = arith.addf %240, %241 : vector<4x32xf32>
    %243 = math.tanh %242 : vector<4x32xf32>
    %244 = arith.mulf %239, %243 : vector<4x32xf32>
    %245 = tpu.concatenate %244, %221 in 1 : vector<4x32xf32>, vector<4x32xf32> -> vector<4x64xf32>
    %cst_44 = arith.constant dense<0.000000e+00> : vector<4x128xf32>
    %246 = tpu.matmul %245, %1, %cst_44 {dimension_numbers = #tpu.dot_dimension_numbers<[1], [0], [0], [1], [0, 0, 1, 1], [], []>} : vector<4x64xf32>, vector<64x128xf32>, vector<4x128xf32> -> vector<4x128xf32>
    %247 = arith.addf %246, %7 : vector<4x128xf32>
    %248 = vector.extract_strided_slice %247 {offsets = [0, 0], sizes = [4, 96], strides = [1, 1]} : vector<4x128xf32> to vector<4x96xf32>
    %249 = arith.negf %248 : vector<4x96xf32>
    %250 = math.exp %249 : vector<4x96xf32>
    %cst_45 = arith.constant 1.000000e+00 : f32
    %251 = vector.broadcast %cst_45 : f32 to vector<4x96xf32>
    %252 = arith.addf %251, %250 : vector<4x96xf32>
    %253 = arith.divf %251, %252 : vector<4x96xf32>
    %254 = vector.extract_strided_slice %247 {offsets = [0, 96], sizes = [4, 32], strides = [1, 1]} : vector<4x128xf32> to vector<4x32xf32>
    %255 = math.tanh %254 : vector<4x32xf32>
    %256 = vector.extract_strided_slice %253 {offsets = [0, 0], sizes = [4, 32], strides = [1, 1]} : vector<4x96xf32> to vector<4x32xf32>
    %257 = vector.extract_strided_slice %253 {offsets = [0, 32], sizes = [4, 32], strides = [1, 1]} : vector<4x96xf32> to vector<4x32xf32>
    %258 = vector.extract_strided_slice %253 {offsets = [0, 64], sizes = [4, 32], strides = [1, 1]} : vector<4x96xf32> to vector<4x32xf32>
    %259 = arith.mulf %257, %219 : vector<4x32xf32>
    %260 = arith.mulf %256, %255 : vector<4x32xf32>
    %261 = arith.addf %259, %260 : vector<4x32xf32>
    %262 = math.tanh %261 : vector<4x32xf32>
    %263 = arith.mulf %258, %262 : vector<4x32xf32>
    %c6 = arith.constant 6 : index
    %c0_46 = arith.constant 0 : index
    %c0_47 = arith.constant 0 : index
    %264 = vector.load %arg0[%c6, %c0_46, %c0_47] : memref<8x4x1xf32, #tpu.memory_space<vmem>>, vector<1x4x1xf32>
    %265 = vector.shape_cast %264 : vector<1x4x1xf32> to vector<4x1xf32>
    %266 = vector.broadcast %265 : vector<4x1xf32> to vector<4x128xf32>
    %267 = arith.mulf %266, %10 : vector<4x128xf32>
    %cst_48 = arith.constant dense<0.000000e+00> : vector<4x128xf32>
    %268 = tpu.matmul %244, %0, %cst_48 {dimension_numbers = #tpu.dot_dimension_numbers<[1], [0], [0], [1], [0, 0, 1, 1], [], []>} : vector<4x32xf32>, vector<32x128xf32>, vector<4x128xf32> -> vector<4x128xf32>
    %269 = arith.addf %267, %268 : vector<4x128xf32>
    %270 = arith.addf %269, %4 : vector<4x128xf32>
    %271 = vector.extract_strided_slice %270 {offsets = [0, 0], sizes = [4, 96], strides = [1, 1]} : vector<4x128xf32> to vector<4x96xf32>
    %272 = arith.negf %271 : vector<4x96xf32>
    %273 = math.exp %272 : vector<4x96xf32>
    %cst_49 = arith.constant 1.000000e+00 : f32
    %274 = vector.broadcast %cst_49 : f32 to vector<4x96xf32>
    %275 = arith.addf %274, %273 : vector<4x96xf32>
    %276 = arith.divf %274, %275 : vector<4x96xf32>
    %277 = vector.extract_strided_slice %270 {offsets = [0, 96], sizes = [4, 32], strides = [1, 1]} : vector<4x128xf32> to vector<4x32xf32>
    %278 = math.tanh %277 : vector<4x32xf32>
    %279 = vector.extract_strided_slice %276 {offsets = [0, 0], sizes = [4, 32], strides = [1, 1]} : vector<4x96xf32> to vector<4x32xf32>
    %280 = vector.extract_strided_slice %276 {offsets = [0, 32], sizes = [4, 32], strides = [1, 1]} : vector<4x96xf32> to vector<4x32xf32>
    %281 = vector.extract_strided_slice %276 {offsets = [0, 64], sizes = [4, 32], strides = [1, 1]} : vector<4x96xf32> to vector<4x32xf32>
    %282 = arith.mulf %280, %242 : vector<4x32xf32>
    %283 = arith.mulf %279, %278 : vector<4x32xf32>
    %284 = arith.addf %282, %283 : vector<4x32xf32>
    %285 = math.tanh %284 : vector<4x32xf32>
    %286 = arith.mulf %281, %285 : vector<4x32xf32>
    %287 = tpu.concatenate %286, %263 in 1 : vector<4x32xf32>, vector<4x32xf32> -> vector<4x64xf32>
    %cst_50 = arith.constant dense<0.000000e+00> : vector<4x128xf32>
    %288 = tpu.matmul %287, %1, %cst_50 {dimension_numbers = #tpu.dot_dimension_numbers<[1], [0], [0], [1], [0, 0, 1, 1], [], []>} : vector<4x64xf32>, vector<64x128xf32>, vector<4x128xf32> -> vector<4x128xf32>
    %289 = arith.addf %288, %7 : vector<4x128xf32>
    %290 = vector.extract_strided_slice %289 {offsets = [0, 0], sizes = [4, 96], strides = [1, 1]} : vector<4x128xf32> to vector<4x96xf32>
    %291 = arith.negf %290 : vector<4x96xf32>
    %292 = math.exp %291 : vector<4x96xf32>
    %cst_51 = arith.constant 1.000000e+00 : f32
    %293 = vector.broadcast %cst_51 : f32 to vector<4x96xf32>
    %294 = arith.addf %293, %292 : vector<4x96xf32>
    %295 = arith.divf %293, %294 : vector<4x96xf32>
    %296 = vector.extract_strided_slice %289 {offsets = [0, 96], sizes = [4, 32], strides = [1, 1]} : vector<4x128xf32> to vector<4x32xf32>
    %297 = math.tanh %296 : vector<4x32xf32>
    %298 = vector.extract_strided_slice %295 {offsets = [0, 0], sizes = [4, 32], strides = [1, 1]} : vector<4x96xf32> to vector<4x32xf32>
    %299 = vector.extract_strided_slice %295 {offsets = [0, 32], sizes = [4, 32], strides = [1, 1]} : vector<4x96xf32> to vector<4x32xf32>
    %300 = vector.extract_strided_slice %295 {offsets = [0, 64], sizes = [4, 32], strides = [1, 1]} : vector<4x96xf32> to vector<4x32xf32>
    %301 = arith.mulf %299, %261 : vector<4x32xf32>
    %302 = arith.mulf %298, %297 : vector<4x32xf32>
    %303 = arith.addf %301, %302 : vector<4x32xf32>
    %304 = math.tanh %303 : vector<4x32xf32>
    %305 = arith.mulf %300, %304 : vector<4x32xf32>
    %c7 = arith.constant 7 : index
    %c0_52 = arith.constant 0 : index
    %c0_53 = arith.constant 0 : index
    %306 = vector.load %arg0[%c7, %c0_52, %c0_53] : memref<8x4x1xf32, #tpu.memory_space<vmem>>, vector<1x4x1xf32>
    %307 = vector.shape_cast %306 : vector<1x4x1xf32> to vector<4x1xf32>
    %308 = vector.broadcast %307 : vector<4x1xf32> to vector<4x128xf32>
    %309 = arith.mulf %308, %10 : vector<4x128xf32>
    %cst_54 = arith.constant dense<0.000000e+00> : vector<4x128xf32>
    %310 = tpu.matmul %286, %0, %cst_54 {dimension_numbers = #tpu.dot_dimension_numbers<[1], [0], [0], [1], [0, 0, 1, 1], [], []>} : vector<4x32xf32>, vector<32x128xf32>, vector<4x128xf32> -> vector<4x128xf32>
    %311 = arith.addf %309, %310 : vector<4x128xf32>
    %312 = arith.addf %311, %4 : vector<4x128xf32>
    %313 = vector.extract_strided_slice %312 {offsets = [0, 0], sizes = [4, 96], strides = [1, 1]} : vector<4x128xf32> to vector<4x96xf32>
    %314 = arith.negf %313 : vector<4x96xf32>
    %315 = math.exp %314 : vector<4x96xf32>
    %cst_55 = arith.constant 1.000000e+00 : f32
    %316 = vector.broadcast %cst_55 : f32 to vector<4x96xf32>
    %317 = arith.addf %316, %315 : vector<4x96xf32>
    %318 = arith.divf %316, %317 : vector<4x96xf32>
    %319 = vector.extract_strided_slice %312 {offsets = [0, 96], sizes = [4, 32], strides = [1, 1]} : vector<4x128xf32> to vector<4x32xf32>
    %320 = math.tanh %319 : vector<4x32xf32>
    %321 = vector.extract_strided_slice %318 {offsets = [0, 0], sizes = [4, 32], strides = [1, 1]} : vector<4x96xf32> to vector<4x32xf32>
    %322 = vector.extract_strided_slice %318 {offsets = [0, 32], sizes = [4, 32], strides = [1, 1]} : vector<4x96xf32> to vector<4x32xf32>
    %323 = vector.extract_strided_slice %318 {offsets = [0, 64], sizes = [4, 32], strides = [1, 1]} : vector<4x96xf32> to vector<4x32xf32>
    %324 = arith.mulf %322, %284 : vector<4x32xf32>
    %325 = arith.mulf %321, %320 : vector<4x32xf32>
    %326 = arith.addf %324, %325 : vector<4x32xf32>
    %327 = math.tanh %326 : vector<4x32xf32>
    %328 = arith.mulf %323, %327 : vector<4x32xf32>
    %329 = tpu.concatenate %328, %305 in 1 : vector<4x32xf32>, vector<4x32xf32> -> vector<4x64xf32>
    %cst_56 = arith.constant dense<0.000000e+00> : vector<4x128xf32>
    %330 = tpu.matmul %329, %1, %cst_56 {dimension_numbers = #tpu.dot_dimension_numbers<[1], [0], [0], [1], [0, 0, 1, 1], [], []>} : vector<4x64xf32>, vector<64x128xf32>, vector<4x128xf32> -> vector<4x128xf32>
    %331 = arith.addf %330, %7 : vector<4x128xf32>
    %332 = vector.extract_strided_slice %331 {offsets = [0, 0], sizes = [4, 96], strides = [1, 1]} : vector<4x128xf32> to vector<4x96xf32>
    %333 = arith.negf %332 : vector<4x96xf32>
    %334 = math.exp %333 : vector<4x96xf32>
    %cst_57 = arith.constant 1.000000e+00 : f32
    %335 = vector.broadcast %cst_57 : f32 to vector<4x96xf32>
    %336 = arith.addf %335, %334 : vector<4x96xf32>
    %337 = arith.divf %335, %336 : vector<4x96xf32>
    %338 = vector.extract_strided_slice %331 {offsets = [0, 96], sizes = [4, 32], strides = [1, 1]} : vector<4x128xf32> to vector<4x32xf32>
    %339 = math.tanh %338 : vector<4x32xf32>
    %340 = vector.extract_strided_slice %337 {offsets = [0, 0], sizes = [4, 32], strides = [1, 1]} : vector<4x96xf32> to vector<4x32xf32>
    %341 = vector.extract_strided_slice %337 {offsets = [0, 32], sizes = [4, 32], strides = [1, 1]} : vector<4x96xf32> to vector<4x32xf32>
    %342 = vector.extract_strided_slice %337 {offsets = [0, 64], sizes = [4, 32], strides = [1, 1]} : vector<4x96xf32> to vector<4x32xf32>
    %343 = arith.mulf %341, %303 : vector<4x32xf32>
    %344 = arith.mulf %340, %339 : vector<4x32xf32>
    %345 = arith.addf %343, %344 : vector<4x32xf32>
    %346 = math.tanh %345 : vector<4x32xf32>
    %347 = arith.mulf %342, %346 : vector<4x32xf32>
    %c0_58 = arith.constant 0 : index
    %c0_59 = arith.constant 0 : index
    %348 = vector.load %arg6[%c0_58, %c0_59] : memref<32x1xf32, #tpu.memory_space<vmem>>, vector<32x1xf32>
    %cst_60 = arith.constant dense<0.000000e+00> : vector<4x1xf32>
    %349 = tpu.matmul %347, %348, %cst_60 {dimension_numbers = #tpu.dot_dimension_numbers<[1], [0], [0], [1], [0, 0, 1, 1], [], []>} : vector<4x32xf32>, vector<32x1xf32>, vector<4x1xf32> -> vector<4x1xf32>
    %c0_61 = arith.constant 0 : index
    %c0_62 = arith.constant 0 : index
    %350 = vector.load %arg7[%c0_61, %c0_62] : memref<1x1xf32, #tpu.memory_space<vmem>>, vector<1x1xf32>
    %351 = vector.broadcast %350 : vector<1x1xf32> to vector<4x1xf32>
    %352 = arith.addf %349, %351 : vector<4x1xf32>
    %c0_63 = arith.constant 0 : index
    %c0_64 = arith.constant 0 : index
    %353 = vector.load %arg8[%c0_63, %c0_64] : memref<4x1xf32, #tpu.memory_space<vmem>>, vector<4x1xf32>
    tpu.vector_store %arg8[%c0_63, %c0_64], %352 {strides = array<i32>} : memref<4x1xf32, #tpu.memory_space<vmem>>, vector<4x1xf32>,
    return
  }
}

</mosaic_0001>

<llo_original>
// kernel: tpu_custom_call.1
$region0: #{tpu_custom_call.1}
  #allocation0 [shape = 'u32[]', space=smem, size = 0x4, offset = 0x4, fixed_abs, tag = 'smem constant byte address 0x4 - core index']
  #allocation1 [shape = 'u32[144,128]{1,0:T(1,128)}', space=vmem, size = 0x12000, scoped, tag = 'internal scratch']
  #allocation2 [shape = 'f32[1,1]{1,0:T(1,128)S(1)}', space=vmem, size = 0x200, scoped, tag = 'scoped memory for tpu_custom_call.1']
  %s0 = inlined_call_operand.vmem [shape: f32[8,4,1], index: 0, kind: input, shape index: {}]
  %s1 = inlined_call_operand.vmem [shape: f32[1,128], index: 1, kind: input, shape index: {}]
  %s2 = inlined_call_operand.hbm [shape: f32[32,128], index: 2, kind: input, shape index: {}]
  %s3 = inlined_call_operand.vmem [shape: f32[1,128], index: 3, kind: input, shape index: {}]
  %s4 = inlined_call_operand.vmem [shape: f32[64,128], index: 4, kind: input, shape index: {}]
  %s5 = inlined_call_operand.vmem [shape: f32[1,128], index: 5, kind: input, shape index: {}]
  %s6 = inlined_call_operand.vmem [shape: f32[32,1], index: 6, kind: input, shape index: {}]
  %s7 = inlined_call_operand.<no memory space> [shape: f32[1,1], index: 7, kind: input, shape index: {}]
  %s8 = inlined_call_operand.vmem [shape: f32[4,1], index: 8, kind: output, shape index: {}]
  %s9 = sld [smem:[#allocation0]]
  $region46: #{tpu_custom_call.1} parent=0
    _
  %s11 = ssub.s32 1, %s9
  %s12 = scalar_select 0, %s11, %s9
  %v13 = vstv %s7
  %14 = vst [vmem:[#allocation2] sm:$0x1] %v13
  $region1: #{tpu_custom_call.1} parent=0
    #allocation3 [shape = 'u8[16384]{0}', space=vmem, size = 0x4000, scoped, tag = 'input window, operand 2, single buffered']
    #allocation4 [shape = 's32[1]{0}', space=sflag, size = 0x4, scoped, tag = 'scoped memory for tpu_custom_call.1']
    %15 = vsyncpa [#allocation4], 0
    // Predicated region
    $region2: #{tpu_custom_call.1} parent=1 // pred_check
      _
    $region3: #{tpu_custom_call.1} parent=1 // pred_check_branch
      %17 = sbr.rel (0) target = $region5
    $region4: #{tpu_custom_call.1} parent=1 // pred_region
      _
    $region5: #{tpu_custom_call.1} parent=1 // pred_fallthru
      _
    // Predicated region
    $region6: #{tpu_custom_call.1} parent=1 // pred_check
      _
    $region7: #{tpu_custom_call.1} parent=1 // pred_check_branch
      %19 = sbr.rel (0) target = $region9
    $region8: #{tpu_custom_call.1} parent=1 // pred_region
      _
    $region9: #{tpu_custom_call.1} parent=1 // pred_fallthru
      _
    // Predicated region
    $region10: #{tpu_custom_call.1} parent=1 // pred_check
      _
    $region11: #{tpu_custom_call.1} parent=1 // pred_check_branch
      %21 = sbr.rel (0) target = $region13
    $region12: #{tpu_custom_call.1} parent=1 // pred_region
      %s23 = ssub.s32 512, 512
      %24 = vsyncadd [#allocation4], %s23
      %s25 = sshll.u32 [#allocation3], 4
      %s26 = int_to_ptr.vmem [resolvable:$true] %s25
      %31 = dma.hbm_to_vmem [thread:$0]  %s2, 512, %s26, [#allocation4], 128, 128, 8
    $region13: #{tpu_custom_call.1} parent=1 // pred_fallthru
      _
    // Predicated region
    $region14: #{tpu_custom_call.1} parent=1 // pred_check
      _
    $region15: #{tpu_custom_call.1} parent=1 // pred_check_branch
      %33 = sbr.rel (0) target = $region17
    $region16: #{tpu_custom_call.1} parent=1 // pred_region
      _
    $region17: #{tpu_custom_call.1} parent=1 // pred_fallthru
      _
    // Predicated region
    $region18: #{tpu_custom_call.1} parent=1 // pred_check
      _
    $region19: #{tpu_custom_call.1} parent=1 // pred_check_branch
      %35 = sbr.rel (0) target = $region21
    $region20: #{tpu_custom_call.1} parent=1 // pred_region
      _
    $region21: #{tpu_custom_call.1} parent=1 // pred_fallthru
      _
    // Predicated region
    $region22: #{tpu_custom_call.1} parent=1 // pred_check
      _
    $region23: #{tpu_custom_call.1} parent=1 // pred_check_branch
      %37 = sbr.rel (0) target = $region25
    $region24: #{tpu_custom_call.1} parent=1 // pred_region
      _
    $region25: #{tpu_custom_call.1} parent=1 // pred_fallthru
      _
    // Predicated region
    $region26: #{tpu_custom_call.1} parent=1 // pred_check
      _
    $region27: #{tpu_custom_call.1} parent=1 // pred_check_branch
      %39 = sbr.rel (0) target = $region29
    $region28: #{tpu_custom_call.1} parent=1 // pred_region
      _
    $region29: #{tpu_custom_call.1} parent=1 // pred_fallthru
      _
    // Predicated region
    $region30: #{tpu_custom_call.1} parent=1 // pred_check
      _
    $region31: #{tpu_custom_call.1} parent=1 // pred_check_branch
      %41 = sbr.rel (0) target = $region33
    $region32: #{tpu_custom_call.1} parent=1 // pred_region
      _
    $region33: #{tpu_custom_call.1} parent=1 // pred_fallthru
      _
    // Predicated region
    $region34: #{tpu_custom_call.1} parent=1 // pred_check
      _
    $region35: #{tpu_custom_call.1} parent=1 // pred_check_branch
      %43 = sbr.rel (0) target = $region37
    $region36: #{tpu_custom_call.1} parent=1 // pred_region
      %44 = dma.done [#allocation4], 512
    $region37: #{tpu_custom_call.1} parent=1 // pred_fallthru
      _
    %v45 = vld [vmem:[#allocation3] sm:$0xff]
    %v46 = vld [vmem:[#allocation3 + $0x8] sm:$0xff]
    %v47 = vld [vmem:[#allocation3 + $0x10] sm:$0xff]
    %v48 = vld [vmem:[#allocation3 + $0x18] sm:$0xff]
    %v49 = vld [vmem:[%s4] sm:$0xff]
    %v50 = vld [vmem:[%s4 + $0x8] sm:$0xff]
    %v51 = vld [vmem:[%s4 + $0x10] sm:$0xff]
    %v52 = vld [vmem:[%s4 + $0x18] sm:$0xff]
    %v53 = vld [vmem:[%s4 + $0x20] sm:$0xff]
    %v54 = vld [vmem:[%s4 + $0x28] sm:$0xff]
    %v55 = vld [vmem:[%s4 + $0x30] sm:$0xff]
    %v56 = vld [vmem:[%s4 + $0x38] sm:$0xff]
    %v57 = vld [vmem:[%s3] sm:$0x1]
    %v59 = vlaneseq
    %v60 = vshrl.u32 %v59, 7
    %v61 = vsub.s32 0, %v60
    %v62 = vrot.slane %v57, %v61
    %v64 = vld [vmem:[%s5] sm:$0x1]
    %v66 = vlaneseq
    %v67 = vshrl.u32 %v66, 7
    %v68 = vsub.s32 0, %v67
    %v69 = vrot.slane %v64, %v68
    %v71 = vld [vmem:[%s1] sm:$0x1]
    %v73 = vlaneseq
    %v74 = vshrl.u32 %v73, 7
    %v75 = vsub.s32 0, %v74
    %v76 = vrot.slane %v71, %v75
    %v78 = vld [vmem:[%s0] sm:$0xf]
    %80 = vset.pattern.permute.xlu0 0
    %81 = vperm.xlu0 %80, %v78
    %v82 = vpop.permute.xlu0 %81
    %v84 = vmul.f32 %v82, %v76
    %vm85 = vcmask 261120
    %v87 = vsel %vm85, 0.0, 0
    %89 = vmatprep.subr.mxu0 0.0
    %90 = vmatpush1.msra.mxu0 %v45
    %91 = vmatprep.subr.mxu0 0.0
    %92 = vmatpush1.msra.mxu0 %v46
    %93 = vmatprep.subr.mxu0 0.0
    %94 = vmatpush1.msra.mxu0 %v47
    %95 = vmatprep.subr.mxu0 0.0
    %96 = vmatpush1.msra.mxu0 %v48
    %97 = vmatprep.subr.mxu0 0.0
    %98 = vmatpush1.msra.mxu0 0.0
    %99 = vmatprep.subr.mxu0 0.0
    %100 = vmatpush1.msra.mxu0 0.0
    %101 = vmatprep.subr.mxu0 0.0
    %102 = vmatpush1.msra.mxu0 0.0
    %103 = vmatprep.subr.mxu0 0.0
    %104 = vmatpush1.msra.mxu0 0.0
    %105 = vmatprep.subr.mxu0 0.0
    %106 = vmatpush1.msra.mxu0 0.0
    %107 = vmatprep.subr.mxu0 0.0
    %108 = vmatpush1.msra.mxu0 0.0
    %109 = vmatprep.subr.mxu0 0.0
    %110 = vmatpush1.msra.mxu0 0.0
    %111 = vmatprep.subr.mxu0 0.0
    %112 = vmatpush1.msra.mxu0 0.0
    %113 = vmatprep.subr.mxu0 0.0
    %114 = vmatpush1.msra.mxu0 0.0
    %115 = vmatprep.subr.mxu0 0.0
    %116 = vmatpush1.msra.mxu0 0.0
    %117 = vmatprep.subr.mxu0 0.0
    %118 = vmatpush1.msra.mxu0 0.0
    %119 = vmatprep.subr.mxu0 0.0
    %120 = vmatpush1.msra.mxu0 0.0
    %121 = vmatprep.subr.mxu0 0.0
    %122 = vmatpush1.msra.mxu0 0.0
    %123 = vmatprep.subr.mxu0 0.0
    %124 = vmatpush1.msra.mxu0 0.0
    %125 = vmatprep.subr.mxu0 0.0
    %126 = vmatpush1.msra.mxu0 0.0
    %127 = vmatprep.subr.mxu0 0.0
    %128 = vmatpush1.msra.mxu0 0.0
    %129 = vmatprep.subr.mxu0 0.0
    %130 = vmatpush1.msra.mxu0 0.0
    %131 = vmatprep.subr.mxu0 0.0
    %132 = vmatpush1.msra.mxu0 0.0
    %133 = vmatprep.subr.mxu0 0.0
    %134 = vmatpush1.msra.mxu0 0.0
    %135 = vmatprep.subr.mxu0 0.0
    %136 = vmatpush1.msra.mxu0 0.0
    %137 = vmatprep.subr.mxu0 0.0
    %138 = vmatpush1.msra.mxu0 0.0
    %139 = vmatprep.subr.mxu0 0.0
    %140 = vmatpush1.msra.mxu0 0.0
    %141 = vmatprep.subr.mxu0 0.0
    %142 = vmatpush1.msra.mxu0 0.0
    %143 = vmatprep.subr.mxu0 0.0
    %144 = vmatpush1.msra.mxu0 0.0
    %145 = vmatprep.subr.mxu0 0.0
    %146 = vmatpush1.msra.mxu0 0.0
    %147 = vmatprep.subr.mxu0 0.0
    %148 = vmatpush1.msra.mxu0 0.0
    %149 = vmatprep.subr.mxu0 0.0
    %150 = vmatpush1.msra.mxu0 0.0
    %151 = vmatprep.subr.mxu0 0.0
    %152 = vmatpush1.msra.mxu0 0.0
    %153 = vmatprep.mubr.f32.mxu0 0.0
    %154 = vmatmul.mubr.f32.gmra.mrb[0].mxu0 %v87
    %v155 = vpop.f32.mrb[0].mxu0
    %v156 = vadd.f32 0.0, %v155
    %v157 = vpop.f32.mrb[0].mxu0
    %158 = vdwg.mxu0
    %v159 = vadd.f32 %v84, %v156
    %v160 = vadd.f32 %v159, %v62
    %v161 = vxor.u32 %v160, 2147483648
    %v162 = vmul.f32 %v161, 1.442695
    %v163 = vpow.pop %v162
    %v164 = vadd.f32 %v163, 1.0
    %v165 = vrcp.pop %v164
    %v166 = vmul.f32 1.0, %v165
    %v167 = vtanh.pop %v160
    %v168 = vmul.f32 %v166, 0.0
    %170 = vrot.lane.b32.xlu0 %v167, 32
    %v171 = vpop.permute.xlu0 %170
    %v173 = vmul.f32 %v166, %v171
    %175 = vrot.lane.b32.xlu0 %v173, 32
    %v176 = vpop.permute.xlu0 %175
    %v178 = vadd.f32 %v168, %v176
    %v179 = vtanh.pop %v178
    %181 = vrot.lane.b32.xlu0 %v179, 32
    %v182 = vpop.permute.xlu0 %181
    %v184 = vmul.f32 %v166, %v182
    %186 = vrot.lane.b32.xlu0 %v184, 64
    %v187 = vpop.permute.xlu0 %186
    %v189 = vsel %vm85, %v187, 0.0
    %vm190 = vcmask 523264
    %v192 = vsel %vm190, %v189, 0
    %194 = vmatprep.subr.mxu0 0.0
    %195 = vmatpush1.msra.mxu0 %v49
    %196 = vmatprep.subr.mxu0 0.0
    %197 = vmatpush1.msra.mxu0 %v50
    %198 = vmatprep.subr.mxu0 0.0
    %199 = vmatpush1.msra.mxu0 %v51
    %200 = vmatprep.subr.mxu0 0.0
    %201 = vmatpush1.msra.mxu0 %v52
    %202 = vmatprep.subr.mxu0 0.0
    %203 = vmatpush1.msra.mxu0 %v53
    %204 = vmatprep.subr.mxu0 0.0
    %205 = vmatpush1.msra.mxu0 %v54
    %206 = vmatprep.subr.mxu0 0.0
    %207 = vmatpush1.msra.mxu0 %v55
    %208 = vmatprep.subr.mxu0 0.0
    %209 = vmatpush1.msra.mxu0 %v56
    %210 = vmatprep.subr.mxu0 0.0
    %211 = vmatpush1.msra.mxu0 0.0
    %212 = vmatprep.subr.mxu0 0.0
    %213 = vmatpush1.msra.mxu0 0.0
    %214 = vmatprep.subr.mxu0 0.0
    %215 = vmatpush1.msra.mxu0 0.0
    %216 = vmatprep.subr.mxu0 0.0
    %217 = vmatpush1.msra.mxu0 0.0
    %218 = vmatprep.subr.mxu0 0.0
    %219 = vmatpush1.msra.mxu0 0.0
    %220 = vmatprep.subr.mxu0 0.0
    %221 = vmatpush1.msra.mxu0 0.0
    %222 = vmatprep.subr.mxu0 0.0
    %223 = vmatpush1.msra.mxu0 0.0
    %224 = vmatprep.subr.mxu0 0.0
    %225 = vmatpush1.msra.mxu0 0.0
    %226 = vmatprep.subr.mxu0 0.0
    %227 = vmatpush1.msra.mxu0 0.0
    %228 = vmatprep.subr.mxu0 0.0
    %229 = vmatpush1.msra.mxu0 0.0
    %230 = vmatprep.subr.mxu0 0.0
    %231 = vmatpush1.msra.mxu0 0.0
    %232 = vmatprep.subr.mxu0 0.0
    %233 = vmatpush1.msra.mxu0 0.0
    %234 = vmatprep.subr.mxu0 0.0
    %235 = vmatpush1.msra.mxu0 0.0
    %236 = vmatprep.subr.mxu0 0.0
    %237 = vmatpush1.msra.mxu0 0.0
    %238 = vmatprep.subr.mxu0 0.0
    %239 = vmatpush1.msra.mxu0 0.0
    %240 = vmatprep.subr.mxu0 0.0
    %241 = vmatpush1.msra.mxu0 0.0
    %242 = vmatprep.subr.mxu0 0.0
    %243 = vmatpush1.msra.mxu0 0.0
    %244 = vmatprep.subr.mxu0 0.0
    %245 = vmatpush1.msra.mxu0 0.0
    %246 = vmatprep.subr.mxu0 0.0
    %247 = vmatpush1.msra.mxu0 0.0
    %248 = vmatprep.subr.mxu0 0.0
    %249 = vmatpush1.msra.mxu0 0.0
    %250 = vmatprep.subr.mxu0 0.0
    %251 = vmatpush1.msra.mxu0 0.0
    %252 = vmatprep.subr.mxu0 0.0
    %253 = vmatpush1.msra.mxu0 0.0
    %254 = vmatprep.subr.mxu0 0.0
    %255 = vmatpush1.msra.mxu0 0.0
    %256 = vmatprep.subr.mxu0 0.0
    %257 = vmatpush1.msra.mxu0 0.0
    %258 = vmatprep.mubr.f32.mxu0 0.0
    %259 = vmatmul.mubr.f32.gmra.mrb[0].mxu0 %v192
    %v260 = vpop.f32.mrb[0].mxu0
    %v261 = vadd.f32 %v69, %v260
    %v262 = vpop.f32.mrb[0].mxu0
    %263 = vdwg.mxu0
    %v264 = vxor.u32 %v261, 2147483648
    %v265 = vmul.f32 %v264, 1.442695
    %v266 = vpow.pop %v265
    %v267 = vadd.f32 %v266, 1.0
    %v268 = vrcp.pop %v267
    %v269 = vmul.f32 1.0, %v268
    %v270 = vtanh.pop %v261
    %v271 = vmul.f32 %v269, 0.0
    %273 = vrot.lane.b32.xlu0 %v270, 32
    %v274 = vpop.permute.xlu0 %273
    %v276 = vmul.f32 %v269, %v274
    %278 = vrot.lane.b32.xlu0 %v276, 32
    %v279 = vpop.permute.xlu0 %278
    %v281 = vadd.f32 %v271, %v279
    %v282 = vtanh.pop %v281
    %284 = vrot.lane.b32.xlu0 %v282, 32
    %v285 = vpop.permute.xlu0 %284
    %v287 = vmul.f32 %v269, %v285
    %s288 = scalar_lea.vmem %s0, 4
    %v289 = vld [vmem:[%s288] sm:$0xf]
    %291 = vset.pattern.permute.xlu0 0
    %292 = vperm.xlu0 %291, %v289
    %v293 = vpop.permute.xlu0 %292
    %v295 = vmul.f32 %v293, %v76
    %v296 = vsel %vm85, %v187, 0
    %298 = vmatprep.subr.mxu0 0.0
    %299 = vmatpush1.msra.mxu0 %v45
    %300 = vmatprep.subr.mxu0 0.0
    %301 = vmatpush1.msra.mxu0 %v46
    %302 = vmatprep.subr.mxu0 0.0
    %303 = vmatpush1.msra.mxu0 %v47
    %304 = vmatprep.subr.mxu0 0.0
    %305 = vmatpush1.msra.mxu0 %v48
    %306 = vmatprep.subr.mxu0 0.0
    %307 = vmatpush1.msra.mxu0 0.0
    %308 = vmatprep.subr.mxu0 0.0
    %309 = vmatpush1.msra.mxu0 0.0
    %310 = vmatprep.subr.mxu0 0.0
    %311 = vmatpush1.msra.mxu0 0.0
    %312 = vmatprep.subr.mxu0 0.0
    %313 = vmatpush1.msra.mxu0 0.0
    %314 = vmatprep.subr.mxu0 0.0
    %315 = vmatpush1.msra.mxu0 0.0
    %316 = vmatprep.subr.mxu0 0.0
    %317 = vmatpush1.msra.mxu0 0.0
    %318 = vmatprep.subr.mxu0 0.0
    %319 = vmatpush1.msra.mxu0 0.0
    %320 = vmatprep.subr.mxu0 0.0
    %321 = vmatpush1.msra.mxu0 0.0
    %322 = vmatprep.subr.mxu0 0.0
    %323 = vmatpush1.msra.mxu0 0.0
    %324 = vmatprep.subr.mxu0 0.0
    %325 = vmatpush1.msra.mxu0 0.0
    %326 = vmatprep.subr.mxu0 0.0
    %327 = vmatpush1.msra.mxu0 0.0
    %328 = vmatprep.subr.mxu0 0.0
    %329 = vmatpush1.msra.mxu0 0.0
    %330 = vmatprep.subr.mxu0 0.0
    %331 = vmatpush1.msra.mxu0 0.0
    %332 = vmatprep.subr.mxu0 0.0
    %333 = vmatpush1.msra.mxu0 0.0
    %334 = vmatprep.subr.mxu0 0.0
    %335 = vmatpush1.msra.mxu0 0.0
    %336 = vmatprep.subr.mxu0 0.0
    %337 = vmatpush1.msra.mxu0 0.0
    %338 = vmatprep.subr.mxu0 0.0
    %339 = vmatpush1.msra.mxu0 0.0
    %340 = vmatprep.subr.mxu0 0.0
    %341 = vmatpush1.msra.mxu0 0.0
    %342 = vmatprep.subr.mxu0 0.0
    %343 = vmatpush1.msra.mxu0 0.0
    %344 = vmatprep.subr.mxu0 0.0
    %345 = vmatpush1.msra.mxu0 0.0
    %346 = vmatprep.subr.mxu0 0.0
    %347 = vmatpush1.msra.mxu0 0.0
    %348 = vmatprep.subr.mxu0 0.0
    %349 = vmatpush1.msra.mxu0 0.0
    %350 = vmatprep.subr.mxu0 0.0
    %351 = vmatpush1.msra.mxu0 0.0
    %352 = vmatprep.subr.mxu0 0.0
    %353 = vmatpush1.msra.mxu0 0.0
    %354 = vmatprep.subr.mxu0 0.0
    %355 = vmatpush1.msra.mxu0 0.0
    %356 = vmatprep.subr.mxu0 0.0
    %357 = vmatpush1.msra.mxu0 0.0
    %358 = vmatprep.subr.mxu0 0.0
    %359 = vmatpush1.msra.mxu0 0.0
    %360 = vmatprep.subr.mxu0 0.0
    %361 = vmatpush1.msra.mxu0 0.0
    %362 = vmatprep.mubr.f32.mxu0 0.0
    %363 = vmatmul.mubr.f32.gmra.mrb[0].mxu0 %v296
    %v364 = vpop.f32.mrb[0].mxu0
    %v365 = vadd.f32 0.0, %v364
    %v366 = vpop.f32.mrb[0].mxu0
    %367 = vdwg.mxu0
    %v368 = vadd.f32 %v295, %v365
    %v369 = vadd.f32 %v368, %v62
    %v370 = vxor.u32 %v369, 2147483648
    %v371 = vmul.f32 %v370, 1.442695
    %v372 = vpow.pop %v371
    %v373 = vadd.f32 %v372, 1.0
    %v374 = vrcp.pop %v373
    %v375 = vmul.f32 1.0, %v374
    %v376 = vtanh.pop %v369
    %v377 = vmul.f32 %v375, %v178
    %379 = vrot.lane.b32.xlu0 %v376, 32
    %v380 = vpop.permute.xlu0 %379
    %v382 = vmul.f32 %v375, %v380
    %384 = vrot.lane.b32.xlu0 %v382, 32
    %v385 = vpop.permute.xlu0 %384
    %v387 = vadd.f32 %v377, %v385
    %v388 = vtanh.pop %v387
    %390 = vrot.lane.b32.xlu0 %v388, 32
    %v391 = vpop.permute.xlu0 %390
    %v393 = vmul.f32 %v375, %v391
    %395 = vrot.lane.b32.xlu0 %v393, 64
    %v396 = vpop.permute.xlu0 %395
    %399 = vrot.lane.b32.xlu0 %v287, 96
    %v400 = vpop.permute.xlu0 %399
    %v402 = vsel %vm85, %v396, %v400
    %v404 = vsel %vm190, %v402, 0
    %406 = vmatprep.subr.mxu0 0.0
    %407 = vmatpush1.msra.mxu0 %v49
    %408 = vmatprep.subr.mxu0 0.0
    %409 = vmatpush1.msra.mxu0 %v50
    %410 = vmatprep.subr.mxu0 0.0
    %411 = vmatpush1.msra.mxu0 %v51
    %412 = vmatprep.subr.mxu0 0.0
    %413 = vmatpush1.msra.mxu0 %v52
    %414 = vmatprep.subr.mxu0 0.0
    %415 = vmatpush1.msra.mxu0 %v53
    %416 = vmatprep.subr.mxu0 0.0
    %417 = vmatpush1.msra.mxu0 %v54
    %418 = vmatprep.subr.mxu0 0.0
    %419 = vmatpush1.msra.mxu0 %v55
    %420 = vmatprep.subr.mxu0 0.0
    %421 = vmatpush1.msra.mxu0 %v56
    %422 = vmatprep.subr.mxu0 0.0
    %423 = vmatpush1.msra.mxu0 0.0
    %424 = vmatprep.subr.mxu0 0.0
    %425 = vmatpush1.msra.mxu0 0.0
    %426 = vmatprep.subr.mxu0 0.0
    %427 = vmatpush1.msra.mxu0 0.0
    %428 = vmatprep.subr.mxu0 0.0
    %429 = vmatpush1.msra.mxu0 0.0
    %430 = vmatprep.subr.mxu0 0.0
    %431 = vmatpush1.msra.mxu0 0.0
    %432 = vmatprep.subr.mxu0 0.0
    %433 = vmatpush1.msra.mxu0 0.0
    %434 = vmatprep.subr.mxu0 0.0
    %435 = vmatpush1.msra.mxu0 0.0
    %436 = vmatprep.subr.mxu0 0.0
    %437 = vmatpush1.msra.mxu0 0.0
    %438 = vmatprep.subr.mxu0 0.0
    %439 = vmatpush1.msra.mxu0 0.0
    %440 = vmatprep.subr.mxu0 0.0
    %441 = vmatpush1.msra.mxu0 0.0
    %442 = vmatprep.subr.mxu0 0.0
    %443 = vmatpush1.msra.mxu0 0.0
    %444 = vmatprep.subr.mxu0 0.0
    %445 = vmatpush1.msra.mxu0 0.0
    %446 = vmatprep.subr.mxu0 0.0
    %447 = vmatpush1.msra.mxu0 0.0
    %448 = vmatprep.subr.mxu0 0.0
    %449 = vmatpush1.msra.mxu0 0.0
    %450 = vmatprep.subr.mxu0 0.0
    %451 = vmatpush1.msra.mxu0 0.0
    %452 = vmatprep.subr.mxu0 0.0
    %453 = vmatpush1.msra.mxu0 0.0
    %454 = vmatprep.subr.mxu0 0.0
    %455 = vmatpush1.msra.mxu0 0.0
    %456 = vmatprep.subr.mxu0 0.0
    %457 = vmatpush1.msra.mxu0 0.0
    %458 = vmatprep.subr.mxu0 0.0
    %459 = vmatpush1.msra.mxu0 0.0
    %460 = vmatprep.subr.mxu0 0.0
    %461 = vmatpush1.msra.mxu0 0.0
    %462 = vmatprep.subr.mxu0 0.0
    %463 = vmatpush1.msra.mxu0 0.0
    %464 = vmatprep.subr.mxu0 0.0
    %465 = vmatpush1.msra.mxu0 0.0
    %466 = vmatprep.subr.mxu0 0.0
    %467 = vmatpush1.msra.mxu0 0.0
    %468 = vmatprep.subr.mxu0 0.0
    %469 = vmatpush1.msra.mxu0 0.0
    %470 = vmatprep.mubr.f32.mxu0 0.0
    %471 = vmatmul.mubr.f32.gmra.mrb[0].mxu0 %v404
    %v472 = vpop.f32.mrb[0].mxu0
    %v473 = vadd.f32 %v69, %v472
    %v474 = vpop.f32.mrb[0].mxu0
    %475 = vdwg.mxu0
    %v476 = vxor.u32 %v473, 2147483648
    %v477 = vmul.f32 %v476, 1.442695
    %v478 = vpow.pop %v477
    %v479 = vadd.f32 %v478, 1.0
    %v480 = vrcp.pop %v479
    %v481 = vmul.f32 1.0, %v480
    %v482 = vtanh.pop %v473
    %v483 = vmul.f32 %v481, %v281
    %485 = vrot.lane.b32.xlu0 %v482, 32
    %v486 = vpop.permute.xlu0 %485
    %v488 = vmul.f32 %v481, %v486
    %490 = vrot.lane.b32.xlu0 %v488, 32
    %v491 = vpop.permute.xlu0 %490
    %v493 = vadd.f32 %v483, %v491
    %v494 = vtanh.pop %v493
    %496 = vrot.lane.b32.xlu0 %v494, 32
    %v497 = vpop.permute.xlu0 %496
    %v499 = vmul.f32 %v481, %v497
    %s500 = scalar_lea.vmem %s0, 8
    %v501 = vld [vmem:[%s500] sm:$0xf]
    %503 = vset.pattern.permute.xlu0 0
    %504 = vperm.xlu0 %503, %v501
    %v505 = vpop.permute.xlu0 %504
    %v507 = vmul.f32 %v505, %v76
    %v508 = vsel %vm85, %v396, 0
    %510 = vmatprep.subr.mxu0 0.0
    %511 = vmatpush1.msra.mxu0 %v45
    %512 = vmatprep.subr.mxu0 0.0
    %513 = vmatpush1.msra.mxu0 %v46
    %514 = vmatprep.subr.mxu0 0.0
    %515 = vmatpush1.msra.mxu0 %v47
    %516 = vmatprep.subr.mxu0 0.0
    %517 = vmatpush1.msra.mxu0 %v48
    %518 = vmatprep.subr.mxu0 0.0
    %519 = vmatpush1.msra.mxu0 0.0
    %520 = vmatprep.subr.mxu0 0.0
    %521 = vmatpush1.msra.mxu0 0.0
    %522 = vmatprep.subr.mxu0 0.0
    %523 = vmatpush1.msra.mxu0 0.0
    %524 = vmatprep.subr.mxu0 0.0
    %525 = vmatpush1.msra.mxu0 0.0
    %526 = vmatprep.subr.mxu0 0.0
    %527 = vmatpush1.msra.mxu0 0.0
    %528 = vmatprep.subr.mxu0 0.0
    %529 = vmatpush1.msra.mxu0 0.0
    %530 = vmatprep.subr.mxu0 0.0
    %531 = vmatpush1.msra.mxu0 0.0
    %532 = vmatprep.subr.mxu0 0.0
    %533 = vmatpush1.msra.mxu0 0.0
    %534 = vmatprep.subr.mxu0 0.0
    %535 = vmatpush1.msra.mxu0 0.0
    %536 = vmatprep.subr.mxu0 0.0
    %537 = vmatpush1.msra.mxu0 0.0
    %538 = vmatprep.subr.mxu0 0.0
    %539 = vmatpush1.msra.mxu0 0.0
    %540 = vmatprep.subr.mxu0 0.0
    %541 = vmatpush1.msra.mxu0 0.0
    %542 = vmatprep.subr.mxu0 0.0
    %543 = vmatpush1.msra.mxu0 0.0
    %544 = vmatprep.subr.mxu0 0.0
    %545 = vmatpush1.msra.mxu0 0.0
    %546 = vmatprep.subr.mxu0 0.0
    %547 = vmatpush1.msra.mxu0 0.0
    %548 = vmatprep.subr.mxu0 0.0
    %549 = vmatpush1.msra.mxu0 0.0
    %550 = vmatprep.subr.mxu0 0.0
    %551 = vmatpush1.msra.mxu0 0.0
    %552 = vmatprep.subr.mxu0 0.0
    %553 = vmatpush1.msra.mxu0 0.0
    %554 = vmatprep.subr.mxu0 0.0
    %555 = vmatpush1.msra.mxu0 0.0
    %556 = vmatprep.subr.mxu0 0.0
    %557 = vmatpush1.msra.mxu0 0.0
    %558 = vmatprep.subr.mxu0 0.0
    %559 = vmatpush1.msra.mxu0 0.0
    %560 = vmatprep.subr.mxu0 0.0
    %561 = vmatpush1.msra.mxu0 0.0
    %562 = vmatprep.subr.mxu0 0.0
    %563 = vmatpush1.msra.mxu0 0.0
    %564 = vmatprep.subr.mxu0 0.0
    %565 = vmatpush1.msra.mxu0 0.0
    %566 = vmatprep.subr.mxu0 0.0
    %567 = vmatpush1.msra.mxu0 0.0
    %568 = vmatprep.subr.mxu0 0.0
    %569 = vmatpush1.msra.mxu0 0.0
    %570 = vmatprep.subr.mxu0 0.0
    %571 = vmatpush1.msra.mxu0 0.0
    %572 = vmatprep.subr.mxu0 0.0
    %573 = vmatpush1.msra.mxu0 0.0
    %574 = vmatprep.mubr.f32.mxu0 0.0
    %575 = vmatmul.mubr.f32.gmra.mrb[0].mxu0 %v508
    %v576 = vpop.f32.mrb[0].mxu0
    %v577 = vadd.f32 0.0, %v576
    %v578 = vpop.f32.mrb[0].mxu0
    %579 = vdwg.mxu0
    %v580 = vadd.f32 %v507, %v577
    %v581 = vadd.f32 %v580, %v62
    %v582 = vxor.u32 %v581, 2147483648
    %v583 = vmul.f32 %v582, 1.442695
    %v584 = vpow.pop %v583
    %v585 = vadd.f32 %v584, 1.0
    %v586 = vrcp.pop %v585
    %v587 = vmul.f32 1.0, %v586
    %v588 = vtanh.pop %v581
    %v589 = vmul.f32 %v587, %v387
    %591 = vrot.lane.b32.xlu0 %v588, 32
    %v592 = vpop.permute.xlu0 %591
    %v594 = vmul.f32 %v587, %v592
    %596 = vrot.lane.b32.xlu0 %v594, 32
    %v597 = vpop.permute.xlu0 %596
    %v599 = vadd.f32 %v589, %v597
    %v600 = vtanh.pop %v599
    %602 = vrot.lane.b32.xlu0 %v600, 32
    %v603 = vpop.permute.xlu0 %602
    %v605 = vmul.f32 %v587, %v603
    %607 = vrot.lane.b32.xlu0 %v605, 64
    %v608 = vpop.permute.xlu0 %607
    %611 = vrot.lane.b32.xlu0 %v499, 96
    %v612 = vpop.permute.xlu0 %611
    %v614 = vsel %vm85, %v608, %v612
    %v616 = vsel %vm190, %v614, 0
    %618 = vmatprep.subr.mxu0 0.0
    %619 = vmatpush1.msra.mxu0 %v49
    %620 = vmatprep.subr.mxu0 0.0
    %621 = vmatpush1.msra.mxu0 %v50
    %622 = vmatprep.subr.mxu0 0.0
    %623 = vmatpush1.msra.mxu0 %v51
    %624 = vmatprep.subr.mxu0 0.0
    %625 = vmatpush1.msra.mxu0 %v52
    %626 = vmatprep.subr.mxu0 0.0
    %627 = vmatpush1.msra.mxu0 %v53
    %628 = vmatprep.subr.mxu0 0.0
    %629 = vmatpush1.msra.mxu0 %v54
    %630 = vmatprep.subr.mxu0 0.0
    %631 = vmatpush1.msra.mxu0 %v55
    %632 = vmatprep.subr.mxu0 0.0
    %633 = vmatpush1.msra.mxu0 %v56
    %634 = vmatprep.subr.mxu0 0.0
    %635 = vmatpush1.msra.mxu0 0.0
    %636 = vmatprep.subr.mxu0 0.0
    %637 = vmatpush1.msra.mxu0 0.0
    %638 = vmatprep.subr.mxu0 0.0
    %639 = vmatpush1.msra.mxu0 0.0
    %640 = vmatprep.subr.mxu0 0.0
    %641 = vmatpush1.msra.mxu0 0.0
    %642 = vmatprep.subr.mxu0 0.0
    %643 = vmatpush1.msra.mxu0 0.0
    %644 = vmatprep.subr.mxu0 0.0
    %645 = vmatpush1.msra.mxu0 0.0
    %646 = vmatprep.subr.mxu0 0.0
    %647 = vmatpush1.msra.mxu0 0.0
    %648 = vmatprep.subr.mxu0 0.0
    %649 = vmatpush1.msra.mxu0 0.0
    %650 = vmatprep.subr.mxu0 0.0
    %651 = vmatpush1.msra.mxu0 0.0
    %652 = vmatprep.subr.mxu0 0.0
    %653 = vmatpush1.msra.mxu0 0.0
    %654 = vmatprep.subr.mxu0 0.0
    %655 = vmatpush1.msra.mxu0 0.0
    %656 = vmatprep.subr.mxu0 0.0
    %657 = vmatpush1.msra.mxu0 0.0
    %658 = vmatprep.subr.mxu0 0.0
    %659 = vmatpush1.msra.mxu0 0.0
    %660 = vmatprep.subr.mxu0 0.0
    %661 = vmatpush1.msra.mxu0 0.0
    %662 = vmatprep.subr.mxu0 0.0
    %663 = vmatpush1.msra.mxu0 0.0
    %664 = vmatprep.subr.mxu0 0.0
    %665 = vmatpush1.msra.mxu0 0.0
    %666 = vmatprep.subr.mxu0 0.0
    %667 = vmatpush1.msra.mxu0 0.0
    %668 = vmatprep.subr.mxu0 0.0
    %669 = vmatpush1.msra.mxu0 0.0
    %670 = vmatprep.subr.mxu0 0.0
    %671 = vmatpush1.msra.mxu0 0.0
    %672 = vmatprep.subr.mxu0 0.0
    %673 = vmatpush1.msra.mxu0 0.0
    %674 = vmatprep.subr.mxu0 0.0
    %675 = vmatpush1.msra.mxu0 0.0
    %676 = vmatprep.subr.mxu0 0.0
    %677 = vmatpush1.msra.mxu0 0.0
    %678 = vmatprep.subr.mxu0 0.0
    %679 = vmatpush1.msra.mxu0 0.0
    %680 = vmatprep.subr.mxu0 0.0
    %681 = vmatpush1.msra.mxu0 0.0
    %682 = vmatprep.mubr.f32.mxu0 0.0
    %683 = vmatmul.mubr.f32.gmra.mrb[0].mxu0 %v616
    %v684 = vpop.f32.mrb[0].mxu0
    %v685 = vadd.f32 %v69, %v684
    %v686 = vpop.f32.mrb[0].mxu0
    %687 = vdwg.mxu0
    %v688 = vxor.u32 %v685, 2147483648
    %v689 = vmul.f32 %v688, 1.442695
    %v690 = vpow.pop %v689
    %v691 = vadd.f32 %v690, 1.0
    %v692 = vrcp.pop %v691
    %v693 = vmul.f32 1.0, %v692
    %v694 = vtanh.pop %v685
    %v695 = vmul.f32 %v693, %v493
    %697 = vrot.lane.b32.xlu0 %v694, 32
    %v698 = vpop.permute.xlu0 %697
    %v700 = vmul.f32 %v693, %v698
    %702 = vrot.lane.b32.xlu0 %v700, 32
    %v703 = vpop.permute.xlu0 %702
    %v705 = vadd.f32 %v695, %v703
    %v706 = vtanh.pop %v705
    %708 = vrot.lane.b32.xlu0 %v706, 32
    %v709 = vpop.permute.xlu0 %708
    %v711 = vmul.f32 %v693, %v709
    %s712 = scalar_lea.vmem %s0, 12
    %v713 = vld [vmem:[%s712] sm:$0xf]
    %715 = vset.pattern.permute.xlu0 0
    %716 = vperm.xlu0 %715, %v713
    %v717 = vpop.permute.xlu0 %716
    %v719 = vmul.f32 %v717, %v76
    %v720 = vsel %vm85, %v608, 0
    %722 = vmatprep.subr.mxu0 0.0
    %723 = vmatpush1.msra.mxu0 %v45
    %724 = vmatprep.subr.mxu0 0.0
    %725 = vmatpush1.msra.mxu0 %v46
    %726 = vmatprep.subr.mxu0 0.0
    %727 = vmatpush1.msra.mxu0 %v47
    %728 = vmatprep.subr.mxu0 0.0
    %729 = vmatpush1.msra.mxu0 %v48
    %730 = vmatprep.subr.mxu0 0.0
    %731 = vmatpush1.msra.mxu0 0.0
    %732 = vmatprep.subr.mxu0 0.0
    %733 = vmatpush1.msra.mxu0 0.0
    %734 = vmatprep.subr.mxu0 0.0
    %735 = vmatpush1.msra.mxu0 0.0
    %736 = vmatprep.subr.mxu0 0.0
    %737 = vmatpush1.msra.mxu0 0.0
    %738 = vmatprep.subr.mxu0 0.0
    %739 = vmatpush1.msra.mxu0 0.0
    %740 = vmatprep.subr.mxu0 0.0
    %741 = vmatpush1.msra.mxu0 0.0
    %742 = vmatprep.subr.mxu0 0.0
    %743 = vmatpush1.msra.mxu0 0.0
    %744 = vmatprep.subr.mxu0 0.0
    %745 = vmatpush1.msra.mxu0 0.0
    %746 = vmatprep.subr.mxu0 0.0
    %747 = vmatpush1.msra.mxu0 0.0
    %748 = vmatprep.subr.mxu0 0.0
    %749 = vmatpush1.msra.mxu0 0.0
    %750 = vmatprep.subr.mxu0 0.0
    %751 = vmatpush1.msra.mxu0 0.0
    %752 = vmatprep.subr.mxu0 0.0
    %753 = vmatpush1.msra.mxu0 0.0
    %754 = vmatprep.subr.mxu0 0.0
    %755 = vmatpush1.msra.mxu0 0.0
    %756 = vmatprep.subr.mxu0 0.0
    %757 = vmatpush1.msra.mxu0 0.0
    %758 = vmatprep.subr.mxu0 0.0
    %759 = vmatpush1.msra.mxu0 0.0
    %760 = vmatprep.subr.mxu0 0.0
    %761 = vmatpush1.msra.mxu0 0.0
    %762 = vmatprep.subr.mxu0 0.0
    %763 = vmatpush1.msra.mxu0 0.0
    %764 = vmatprep.subr.mxu0 0.0
    %765 = vmatpush1.msra.mxu0 0.0
    %766 = vmatprep.subr.mxu0 0.0
    %767 = vmatpush1.msra.mxu0 0.0
    %768 = vmatprep.subr.mxu0 0.0
    %769 = vmatpush1.msra.mxu0 0.0
    %770 = vmatprep.subr.mxu0 0.0
    %771 = vmatpush1.msra.mxu0 0.0
    %772 = vmatprep.subr.mxu0 0.0
    %773 = vmatpush1.msra.mxu0 0.0
    %774 = vmatprep.subr.mxu0 0.0
    %775 = vmatpush1.msra.mxu0 0.0
    %776 = vmatprep.subr.mxu0 0.0
    %777 = vmatpush1.msra.mxu0 0.0
    %778 = vmatprep.subr.mxu0 0.0
    %779 = vmatpush1.msra.mxu0 0.0
    %780 = vmatprep.subr.mxu0 0.0
    %781 = vmatpush1.msra.mxu0 0.0
    %782 = vmatprep.subr.mxu0 0.0
    %783 = vmatpush1.msra.mxu0 0.0
    %784 = vmatprep.subr.mxu0 0.0
    %785 = vmatpush1.msra.mxu0 0.0
    %786 = vmatprep.mubr.f32.mxu0 0.0
    %787 = vmatmul.mubr.f32.gmra.mrb[0].mxu0 %v720
    %v788 = vpop.f32.mrb[0].mxu0
    %v789 = vadd.f32 0.0, %v788
    %v790 = vpop.f32.mrb[0].mxu0
    %791 = vdwg.mxu0
    %v792 = vadd.f32 %v719, %v789
    %v793 = vadd.f32 %v792, %v62
    %v794 = vxor.u32 %v793, 2147483648
    %v795 = vmul.f32 %v794, 1.442695
    %v796 = vpow.pop %v795
    %v797 = vadd.f32 %v796, 1.0
    %v798 = vrcp.pop %v797
    %v799 = vmul.f32 1.0, %v798
    %v800 = vtanh.pop %v793
    %v801 = vmul.f32 %v799, %v599
    %803 = vrot.lane.b32.xlu0 %v800, 32
    %v804 = vpop.permute.xlu0 %803
    %v806 = vmul.f32 %v799, %v804
    %808 = vrot.lane.b32.xlu0 %v806, 32
    %v809 = vpop.permute.xlu0 %808
    %v811 = vadd.f32 %v801, %v809
    %v812 = vtanh.pop %v811
    %814 = vrot.lane.b32.xlu0 %v812, 32
    %v815 = vpop.permute.xlu0 %814
    %v817 = vmul.f32 %v799, %v815
    %819 = vrot.lane.b32.xlu0 %v817, 64
    %v820 = vpop.permute.xlu0 %819
    %823 = vrot.lane.b32.xlu0 %v711, 96
    %v824 = vpop.permute.xlu0 %823
    %v826 = vsel %vm85, %v820, %v824
    %v828 = vsel %vm190, %v826, 0
    %830 = vmatprep.subr.mxu0 0.0
    %831 = vmatpush1.msra.mxu0 %v49
    %832 = vmatprep.subr.mxu0 0.0
    %833 = vmatpush1.msra.mxu0 %v50
    %834 = vmatprep.subr.mxu0 0.0
    %835 = vmatpush1.msra.mxu0 %v51
    %836 = vmatprep.subr.mxu0 0.0
    %837 = vmatpush1.msra.mxu0 %v52
    %838 = vmatprep.subr.mxu0 0.0
    %839 = vmatpush1.msra.mxu0 %v53
    %840 = vmatprep.subr.mxu0 0.0
    %841 = vmatpush1.msra.mxu0 %v54
    %842 = vmatprep.subr.mxu0 0.0
    %843 = vmatpush1.msra.mxu0 %v55
    %844 = vmatprep.subr.mxu0 0.0
    %845 = vmatpush1.msra.mxu0 %v56
    %846 = vmatprep.subr.mxu0 0.0
    %847 = vmatpush1.msra.mxu0 0.0
    %848 = vmatprep.subr.mxu0 0.0
    %849 = vmatpush1.msra.mxu0 0.0
    %850 = vmatprep.subr.mxu0 0.0
    %851 = vmatpush1.msra.mxu0 0.0
    %852 = vmatprep.subr.mxu0 0.0
    %853 = vmatpush1.msra.mxu0 0.0
    %854 = vmatprep.subr.mxu0 0.0
    %855 = vmatpush1.msra.mxu0 0.0
    %856 = vmatprep.subr.mxu0 0.0
    %857 = vmatpush1.msra.mxu0 0.0
    %858 = vmatprep.subr.mxu0 0.0
    %859 = vmatpush1.msra.mxu0 0.0
    %860 = vmatprep.subr.mxu0 0.0
    %861 = vmatpush1.msra.mxu0 0.0
    %862 = vmatprep.subr.mxu0 0.0
    %863 = vmatpush1.msra.mxu0 0.0
    %864 = vmatprep.subr.mxu0 0.0
    %865 = vmatpush1.msra.mxu0 0.0
    %866 = vmatprep.subr.mxu0 0.0
    %867 = vmatpush1.msra.mxu0 0.0
    %868 = vmatprep.subr.mxu0 0.0
    %869 = vmatpush1.msra.mxu0 0.0
    %870 = vmatprep.subr.mxu0 0.0
    %871 = vmatpush1.msra.mxu0 0.0
    %872 = vmatprep.subr.mxu0 0.0
    %873 = vmatpush1.msra.mxu0 0.0
    %874 = vmatprep.subr.mxu0 0.0
    %875 = vmatpush1.msra.mxu0 0.0
    %876 = vmatprep.subr.mxu0 0.0
    %877 = vmatpush1.msra.mxu0 0.0
    %878 = vmatprep.subr.mxu0 0.0
    %879 = vmatpush1.msra.mxu0 0.0
    %880 = vmatprep.subr.mxu0 0.0
    %881 = vmatpush1.msra.mxu0 0.0
    %882 = vmatprep.subr.mxu0 0.0
    %883 = vmatpush1.msra.mxu0 0.0
    %884 = vmatprep.subr.mxu0 0.0
    %885 = vmatpush1.msra.mxu0 0.0
    %886 = vmatprep.subr.mxu0 0.0
    %887 = vmatpush1.msra.mxu0 0.0
    %888 = vmatprep.subr.mxu0 0.0
    %889 = vmatpush1.msra.mxu0 0.0
    %890 = vmatprep.subr.mxu0 0.0
    %891 = vmatpush1.msra.mxu0 0.0
    %892 = vmatprep.subr.mxu0 0.0
    %893 = vmatpush1.msra.mxu0 0.0
    %894 = vmatprep.mubr.f32.mxu0 0.0
    %895 = vmatmul.mubr.f32.gmra.mrb[0].mxu0 %v828
    %v896 = vpop.f32.mrb[0].mxu0
    %v897 = vadd.f32 %v69, %v896
    %v898 = vpop.f32.mrb[0].mxu0
    %899 = vdwg.mxu0
    %v900 = vxor.u32 %v897, 2147483648
    %v901 = vmul.f32 %v900, 1.442695
    %v902 = vpow.pop %v901
    %v903 = vadd.f32 %v902, 1.0
    %v904 = vrcp.pop %v903
    %v905 = vmul.f32 1.0, %v904
    %v906 = vtanh.pop %v897
    %v907 = vmul.f32 %v905, %v705
    %909 = vrot.lane.b32.xlu0 %v906, 32
    %v910 = vpop.permute.xlu0 %909
    %v912 = vmul.f32 %v905, %v910
    %914 = vrot.lane.b32.xlu0 %v912, 32
    %v915 = vpop.permute.xlu0 %914
    %v917 = vadd.f32 %v907, %v915
    %v918 = vtanh.pop %v917
    %920 = vrot.lane.b32.xlu0 %v918, 32
    %v921 = vpop.permute.xlu0 %920
    %v923 = vmul.f32 %v905, %v921
    %s924 = scalar_lea.vmem %s0, 16
    %v925 = vld [vmem:[%s924] sm:$0xf]
    %927 = vset.pattern.permute.xlu0 0
    %928 = vperm.xlu0 %927, %v925
    %v929 = vpop.permute.xlu0 %928
    %v931 = vmul.f32 %v929, %v76
    %v932 = vsel %vm85, %v820, 0
    %934 = vmatprep.subr.mxu0 0.0
    %935 = vmatpush1.msra.mxu0 %v45
    %936 = vmatprep.subr.mxu0 0.0
    %937 = vmatpush1.msra.mxu0 %v46
    %938 = vmatprep.subr.mxu0 0.0
    %939 = vmatpush1.msra.mxu0 %v47
    %940 = vmatprep.subr.mxu0 0.0
    %941 = vmatpush1.msra.mxu0 %v48
    %942 = vmatprep.subr.mxu0 0.0
    %943 = vmatpush1.msra.mxu0 0.0
    %944 = vmatprep.subr.mxu0 0.0
    %945 = vmatpush1.msra.mxu0 0.0
    %946 = vmatprep.subr.mxu0 0.0
    %947 = vmatpush1.msra.mxu0 0.0
    %948 = vmatprep.subr.mxu0 0.0
    %949 = vmatpush1.msra.mxu0 0.0
    %950 = vmatprep.subr.mxu0 0.0
    %951 = vmatpush1.msra.mxu0 0.0
    %952 = vmatprep.subr.mxu0 0.0
    %953 = vmatpush1.msra.mxu0 0.0
    %954 = vmatprep.subr.mxu0 0.0
    %955 = vmatpush1.msra.mxu0 0.0
    %956 = vmatprep.subr.mxu0 0.0
    %957 = vmatpush1.msra.mxu0 0.0
    %958 = vmatprep.subr.mxu0 0.0
    %959 = vmatpush1.msra.mxu0 0.0
    %960 = vmatprep.subr.mxu0 0.0
    %961 = vmatpush1.msra.mxu0 0.0
    %962 = vmatprep.subr.mxu0 0.0
    %963 = vmatpush1.msra.mxu0 0.0
    %964 = vmatprep.subr.mxu0 0.0
    %965 = vmatpush1.msra.mxu0 0.0
    %966 = vmatprep.subr.mxu0 0.0
    %967 = vmatpush1.msra.mxu0 0.0
    %968 = vmatprep.subr.mxu0 0.0
    %969 = vmatpush1.msra.mxu0 0.0
    %970 = vmatprep.subr.mxu0 0.0
    %971 = vmatpush1.msra.mxu0 0.0
    %972 = vmatprep.subr.mxu0 0.0
    %973 = vmatpush1.msra.mxu0 0.0
    %974 = vmatprep.subr.mxu0 0.0
    %975 = vmatpush1.msra.mxu0 0.0
    %976 = vmatprep.subr.mxu0 0.0
    %977 = vmatpush1.msra.mxu0 0.0
    %978 = vmatprep.subr.mxu0 0.0
    %979 = vmatpush1.msra.mxu0 0.0
    %980 = vmatprep.subr.mxu0 0.0
    %981 = vmatpush1.msra.mxu0 0.0
    %982 = vmatprep.subr.mxu0 0.0
    %983 = vmatpush1.msra.mxu0 0.0
    %984 = vmatprep.subr.mxu0 0.0
    %985 = vmatpush1.msra.mxu0 0.0
    %986 = vmatprep.subr.mxu0 0.0
    %987 = vmatpush1.msra.mxu0 0.0
    %988 = vmatprep.subr.mxu0 0.0
    %989 = vmatpush1.msra.mxu0 0.0
    %990 = vmatprep.subr.mxu0 0.0
    %991 = vmatpush1.msra.mxu0 0.0
    %992 = vmatprep.subr.mxu0 0.0
    %993 = vmatpush1.msra.mxu0 0.0
    %994 = vmatprep.subr.mxu0 0.0
    %995 = vmatpush1.msra.mxu0 0.0
    %996 = vmatprep.subr.mxu0 0.0
    %997 = vmatpush1.msra.mxu0 0.0
    %998 = vmatprep.mubr.f32.mxu0 0.0
    %999 = vmatmul.mubr.f32.gmra.mrb[0].mxu0 %v932
    %v1000 = vpop.f32.mrb[0].mxu0
    %v1001 = vadd.f32 0.0, %v1000
    %v1002 = vpop.f32.mrb[0].mxu0
    %1003 = vdwg.mxu0
    %v1004 = vadd.f32 %v931, %v1001
    %v1005 = vadd.f32 %v1004, %v62
    %v1006 = vxor.u32 %v1005, 2147483648
    %v1007 = vmul.f32 %v1006, 1.442695
    %v1008 = vpow.pop %v1007
    %v1009 = vadd.f32 %v1008, 1.0
    %v1010 = vrcp.pop %v1009
    %v1011 = vmul.f32 1.0, %v1010
    %v1012 = vtanh.pop %v1005
    %v1013 = vmul.f32 %v1011, %v811
    %1015 = vrot.lane.b32.xlu0 %v1012, 32
    %v1016 = vpop.permute.xlu0 %1015
    %v1018 = vmul.f32 %v1011, %v1016
    %1020 = vrot.lane.b32.xlu0 %v1018, 32
    %v1021 = vpop.permute.xlu0 %1020
    %v1023 = vadd.f32 %v1013, %v1021
    %v1024 = vtanh.pop %v1023
    %1026 = vrot.lane.b32.xlu0 %v1024, 32
    %v1027 = vpop.permute.xlu0 %1026
    %v1029 = vmul.f32 %v1011, %v1027
    %1031 = vrot.lane.b32.xlu0 %v1029, 64
    %v1032 = vpop.permute.xlu0 %1031
    %1035 = vrot.lane.b32.xlu0 %v923, 96
    %v1036 = vpop.permute.xlu0 %1035
    %v1038 = vsel %vm85, %v1032, %v1036
    %v1040 = vsel %vm190, %v1038, 0
    %1042 = vmatprep.subr.mxu0 0.0
    %1043 = vmatpush1.msra.mxu0 %v49
    %1044 = vmatprep.subr.mxu0 0.0
    %1045 = vmatpush1.msra.mxu0 %v50
    %1046 = vmatprep.subr.mxu0 0.0
    %1047 = vmatpush1.msra.mxu0 %v51
    %1048 = vmatprep.subr.mxu0 0.0
    %1049 = vmatpush1.msra.mxu0 %v52
    %1050 = vmatprep.subr.mxu0 0.0
    %1051 = vmatpush1.msra.mxu0 %v53
    %1052 = vmatprep.subr.mxu0 0.0
    %1053 = vmatpush1.msra.mxu0 %v54
    %1054 = vmatprep.subr.mxu0 0.0
    %1055 = vmatpush1.msra.mxu0 %v55
    %1056 = vmatprep.subr.mxu0 0.0
    %1057 = vmatpush1.msra.mxu0 %v56
    %1058 = vmatprep.subr.mxu0 0.0
    %1059 = vmatpush1.msra.mxu0 0.0
    %1060 = vmatprep.subr.mxu0 0.0
    %1061 = vmatpush1.msra.mxu0 0.0
    %1062 = vmatprep.subr.mxu0 0.0
    %1063 = vmatpush1.msra.mxu0 0.0
    %1064 = vmatprep.subr.mxu0 0.0
    %1065 = vmatpush1.msra.mxu0 0.0
    %1066 = vmatprep.subr.mxu0 0.0
    %1067 = vmatpush1.msra.mxu0 0.0
    %1068 = vmatprep.subr.mxu0 0.0
    %1069 = vmatpush1.msra.mxu0 0.0
    %1070 = vmatprep.subr.mxu0 0.0
    %1071 = vmatpush1.msra.mxu0 0.0
    %1072 = vmatprep.subr.mxu0 0.0
    %1073 = vmatpush1.msra.mxu0 0.0
    %1074 = vmatprep.subr.mxu0 0.0
    %1075 = vmatpush1.msra.mxu0 0.0
    %1076 = vmatprep.subr.mxu0 0.0
    %1077 = vmatpush1.msra.mxu0 0.0
    %1078 = vmatprep.subr.mxu0 0.0
    %1079 = vmatpush1.msra.mxu0 0.0
    %1080 = vmatprep.subr.mxu0 0.0
    %1081 = vmatpush1.msra.mxu0 0.0
    %1082 = vmatprep.subr.mxu0 0.0
    %1083 = vmatpush1.msra.mxu0 0.0
    %1084 = vmatprep.subr.mxu0 0.0
    %1085 = vmatpush1.msra.mxu0 0.0
    %1086 = vmatprep.subr.mxu0 0.0
    %1087 = vmatpush1.msra.mxu0 0.0
    %1088 = vmatprep.subr.mxu0 0.0
    %1089 = vmatpush1.msra.mxu0 0.0
    %1090 = vmatprep.subr.mxu0 0.0
    %1091 = vmatpush1.msra.mxu0 0.0
    %1092 = vmatprep.subr.mxu0 0.0
    %1093 = vmatpush1.msra.mxu0 0.0
    %1094 = vmatprep.subr.mxu0 0.0
    %1095 = vmatpush1.msra.mxu0 0.0
    %1096 = vmatprep.subr.mxu0 0.0
    %1097 = vmatpush1.msra.mxu0 0.0
    %1098 = vmatprep.subr.mxu0 0.0
    %1099 = vmatpush1.msra.mxu0 0.0
    %1100 = vmatprep.subr.mxu0 0.0
    %1101 = vmatpush1.msra.mxu0 0.0
    %1102 = vmatprep.subr.mxu0 0.0
    %1103 = vmatpush1.msra.mxu0 0.0
    %1104 = vmatprep.subr.mxu0 0.0
    %1105 = vmatpush1.msra.mxu0 0.0
    %1106 = vmatprep.mubr.f32.mxu0 0.0
    %1107 = vmatmul.mubr.f32.gmra.mrb[0].mxu0 %v1040
    %v1108 = vpop.f32.mrb[0].mxu0
    %v1109 = vadd.f32 %v69, %v1108
    %v1110 = vpop.f32.mrb[0].mxu0
    %1111 = vdwg.mxu0
    %v1112 = vxor.u32 %v1109, 2147483648
    %v1113 = vmul.f32 %v1112, 1.442695
    %v1114 = vpow.pop %v1113
    %v1115 = vadd.f32 %v1114, 1.0
    %v1116 = vrcp.pop %v1115
    %v1117 = vmul.f32 1.0, %v1116
    %v1118 = vtanh.pop %v1109
    %v1119 = vmul.f32 %v1117, %v917
    %1121 = vrot.lane.b32.xlu0 %v1118, 32
    %v1122 = vpop.permute.xlu0 %1121
    %v1124 = vmul.f32 %v1117, %v1122
    %1126 = vrot.lane.b32.xlu0 %v1124, 32
    %v1127 = vpop.permute.xlu0 %1126
    %v1129 = vadd.f32 %v1119, %v1127
    %v1130 = vtanh.pop %v1129
    %1132 = vrot.lane.b32.xlu0 %v1130, 32
    %v1133 = vpop.permute.xlu0 %1132
    %v1135 = vmul.f32 %v1117, %v1133
    %s1136 = scalar_lea.vmem %s0, 20
    %v1137 = vld [vmem:[%s1136] sm:$0xf]
    %1139 = vset.pattern.permute.xlu0 0
    %1140 = vperm.xlu0 %1139, %v1137
    %v1141 = vpop.permute.xlu0 %1140
    %v1143 = vmul.f32 %v1141, %v76
    %v1144 = vsel %vm85, %v1032, 0
    %1146 = vmatprep.subr.mxu0 0.0
    %1147 = vmatpush1.msra.mxu0 %v45
    %1148 = vmatprep.subr.mxu0 0.0
    %1149 = vmatpush1.msra.mxu0 %v46
    %1150 = vmatprep.subr.mxu0 0.0
    %1151 = vmatpush1.msra.mxu0 %v47
    %1152 = vmatprep.subr.mxu0 0.0
    %1153 = vmatpush1.msra.mxu0 %v48
    %1154 = vmatprep.subr.mxu0 0.0
    %1155 = vmatpush1.msra.mxu0 0.0
    %1156 = vmatprep.subr.mxu0 0.0
    %1157 = vmatpush1.msra.mxu0 0.0
    %1158 = vmatprep.subr.mxu0 0.0
    %1159 = vmatpush1.msra.mxu0 0.0
    %1160 = vmatprep.subr.mxu0 0.0
    %1161 = vmatpush1.msra.mxu0 0.0
    %1162 = vmatprep.subr.mxu0 0.0
    %1163 = vmatpush1.msra.mxu0 0.0
    %1164 = vmatprep.subr.mxu0 0.0
    %1165 = vmatpush1.msra.mxu0 0.0
    %1166 = vmatprep.subr.mxu0 0.0
    %1167 = vmatpush1.msra.mxu0 0.0
    %1168 = vmatprep.subr.mxu0 0.0
    %1169 = vmatpush1.msra.mxu0 0.0
    %1170 = vmatprep.subr.mxu0 0.0
    %1171 = vmatpush1.msra.mxu0 0.0
    %1172 = vmatprep.subr.mxu0 0.0
    %1173 = vmatpush1.msra.mxu0 0.0
    %1174 = vmatprep.subr.mxu0 0.0
    %1175 = vmatpush1.msra.mxu0 0.0
    %1176 = vmatprep.subr.mxu0 0.0
    %1177 = vmatpush1.msra.mxu0 0.0
    %1178 = vmatprep.subr.mxu0 0.0
    %1179 = vmatpush1.msra.mxu0 0.0
    %1180 = vmatprep.subr.mxu0 0.0
    %1181 = vmatpush1.msra.mxu0 0.0
    %1182 = vmatprep.subr.mxu0 0.0
    %1183 = vmatpush1.msra.mxu0 0.0
    %1184 = vmatprep.subr.mxu0 0.0
    %1185 = vmatpush1.msra.mxu0 0.0
    %1186 = vmatprep.subr.mxu0 0.0
    %1187 = vmatpush1.msra.mxu0 0.0
    %1188 = vmatprep.subr.mxu0 0.0
    %1189 = vmatpush1.msra.mxu0 0.0
    %1190 = vmatprep.subr.mxu0 0.0
    %1191 = vmatpush1.msra.mxu0 0.0
    %1192 = vmatprep.subr.mxu0 0.0
    %1193 = vmatpush1.msra.mxu0 0.0
    %1194 = vmatprep.subr.mxu0 0.0
    %1195 = vmatpush1.msra.mxu0 0.0
    %1196 = vmatprep.subr.mxu0 0.0
    %1197 = vmatpush1.msra.mxu0 0.0
    %1198 = vmatprep.subr.mxu0 0.0
    %1199 = vmatpush1.msra.mxu0 0.0
    %1200 = vmatprep.subr.mxu0 0.0
    %1201 = vmatpush1.msra.mxu0 0.0
    %1202 = vmatprep.subr.mxu0 0.0
    %1203 = vmatpush1.msra.mxu0 0.0
    %1204 = vmatprep.subr.mxu0 0.0
    %1205 = vmatpush1.msra.mxu0 0.0
    %1206 = vmatprep.subr.mxu0 0.0
    %1207 = vmatpush1.msra.mxu0 0.0
    %1208 = vmatprep.subr.mxu0 0.0
    %1209 = vmatpush1.msra.mxu0 0.0
    %1210 = vmatprep.mubr.f32.mxu0 0.0
    %1211 = vmatmul.mubr.f32.gmra.mrb[0].mxu0 %v1144
    %v1212 = vpop.f32.mrb[0].mxu0
    %v1213 = vadd.f32 0.0, %v1212
    %v1214 = vpop.f32.mrb[0].mxu0
    %1215 = vdwg.mxu0
    %v1216 = vadd.f32 %v1143, %v1213
    %v1217 = vadd.f32 %v1216, %v62
    %v1218 = vxor.u32 %v1217, 2147483648
    %v1219 = vmul.f32 %v1218, 1.442695
    %v1220 = vpow.pop %v1219
    %v1221 = vadd.f32 %v1220, 1.0
    %v1222 = vrcp.pop %v1221
    %v1223 = vmul.f32 1.0, %v1222
    %v1224 = vtanh.pop %v1217
    %v1225 = vmul.f32 %v1223, %v1023
    %1227 = vrot.lane.b32.xlu0 %v1224, 32
    %v1228 = vpop.permute.xlu0 %1227
    %v1230 = vmul.f32 %v1223, %v1228
    %1232 = vrot.lane.b32.xlu0 %v1230, 32
    %v1233 = vpop.permute.xlu0 %1232
    %v1235 = vadd.f32 %v1225, %v1233
    %v1236 = vtanh.pop %v1235
    %1238 = vrot.lane.b32.xlu0 %v1236, 32
    %v1239 = vpop.permute.xlu0 %1238
    %v1241 = vmul.f32 %v1223, %v1239
    %1243 = vrot.lane.b32.xlu0 %v1241, 64
    %v1244 = vpop.permute.xlu0 %1243
    %1247 = vrot.lane.b32.xlu0 %v1135, 96
    %v1248 = vpop.permute.xlu0 %1247
    %v1250 = vsel %vm85, %v1244, %v1248
    %v1252 = vsel %vm190, %v1250, 0
    %1254 = vmatprep.subr.mxu0 0.0
    %1255 = vmatpush1.msra.mxu0 %v49
    %1256 = vmatprep.subr.mxu0 0.0
    %1257 = vmatpush1.msra.mxu0 %v50
    %1258 = vmatprep.subr.mxu0 0.0
    %1259 = vmatpush1.msra.mxu0 %v51
    %1260 = vmatprep.subr.mxu0 0.0
    %1261 = vmatpush1.msra.mxu0 %v52
    %1262 = vmatprep.subr.mxu0 0.0
    %1263 = vmatpush1.msra.mxu0 %v53
    %1264 = vmatprep.subr.mxu0 0.0
    %1265 = vmatpush1.msra.mxu0 %v54
    %1266 = vmatprep.subr.mxu0 0.0
    %1267 = vmatpush1.msra.mxu0 %v55
    %1268 = vmatprep.subr.mxu0 0.0
    %1269 = vmatpush1.msra.mxu0 %v56
    %1270 = vmatprep.subr.mxu0 0.0
    %1271 = vmatpush1.msra.mxu0 0.0
    %1272 = vmatprep.subr.mxu0 0.0
    %1273 = vmatpush1.msra.mxu0 0.0
    %1274 = vmatprep.subr.mxu0 0.0
    %1275 = vmatpush1.msra.mxu0 0.0
    %1276 = vmatprep.subr.mxu0 0.0
    %1277 = vmatpush1.msra.mxu0 0.0
    %1278 = vmatprep.subr.mxu0 0.0
    %1279 = vmatpush1.msra.mxu0 0.0
    %1280 = vmatprep.subr.mxu0 0.0
    %1281 = vmatpush1.msra.mxu0 0.0
    %1282 = vmatprep.subr.mxu0 0.0
    %1283 = vmatpush1.msra.mxu0 0.0
    %1284 = vmatprep.subr.mxu0 0.0
    %1285 = vmatpush1.msra.mxu0 0.0
    %1286 = vmatprep.subr.mxu0 0.0
    %1287 = vmatpush1.msra.mxu0 0.0
    %1288 = vmatprep.subr.mxu0 0.0
    %1289 = vmatpush1.msra.mxu0 0.0
    %1290 = vmatprep.subr.mxu0 0.0
    %1291 = vmatpush1.msra.mxu0 0.0
    %1292 = vmatprep.subr.mxu0 0.0
    %1293 = vmatpush1.msra.mxu0 0.0
    %1294 = vmatprep.subr.mxu0 0.0
    %1295 = vmatpush1.msra.mxu0 0.0
    %1296 = vmatprep.subr.mxu0 0.0
    %1297 = vmatpush1.msra.mxu0 0.0
    %1298 = vmatprep.subr.mxu0 0.0
    %1299 = vmatpush1.msra.mxu0 0.0
    %1300 = vmatprep.subr.mxu0 0.0
    %1301 = vmatpush1.msra.mxu0 0.0
    %1302 = vmatprep.subr.mxu0 0.0
    %1303 = vmatpush1.msra.mxu0 0.0
    %1304 = vmatprep.subr.mxu0 0.0
    %1305 = vmatpush1.msra.mxu0 0.0
    %1306 = vmatprep.subr.mxu0 0.0
    %1307 = vmatpush1.msra.mxu0 0.0
    %1308 = vmatprep.subr.mxu0 0.0
    %1309 = vmatpush1.msra.mxu0 0.0
    %1310 = vmatprep.subr.mxu0 0.0
    %1311 = vmatpush1.msra.mxu0 0.0
    %1312 = vmatprep.subr.mxu0 0.0
    %1313 = vmatpush1.msra.mxu0 0.0
    %1314 = vmatprep.subr.mxu0 0.0
    %1315 = vmatpush1.msra.mxu0 0.0
    %1316 = vmatprep.subr.mxu0 0.0
    %1317 = vmatpush1.msra.mxu0 0.0
    %1318 = vmatprep.mubr.f32.mxu0 0.0
    %1319 = vmatmul.mubr.f32.gmra.mrb[0].mxu0 %v1252
    %v1320 = vpop.f32.mrb[0].mxu0
    %v1321 = vadd.f32 %v69, %v1320
    %v1322 = vpop.f32.mrb[0].mxu0
    %1323 = vdwg.mxu0
    %v1324 = vxor.u32 %v1321, 2147483648
    %v1325 = vmul.f32 %v1324, 1.442695
    %v1326 = vpow.pop %v1325
    %v1327 = vadd.f32 %v1326, 1.0
    %v1328 = vrcp.pop %v1327
    %v1329 = vmul.f32 1.0, %v1328
    %v1330 = vtanh.pop %v1321
    %v1331 = vmul.f32 %v1329, %v1129
    %1333 = vrot.lane.b32.xlu0 %v1330, 32
    %v1334 = vpop.permute.xlu0 %1333
    %v1336 = vmul.f32 %v1329, %v1334
    %1338 = vrot.lane.b32.xlu0 %v1336, 32
    %v1339 = vpop.permute.xlu0 %1338
    %v1341 = vadd.f32 %v1331, %v1339
    %v1342 = vtanh.pop %v1341
    %1344 = vrot.lane.b32.xlu0 %v1342, 32
    %v1345 = vpop.permute.xlu0 %1344
    %v1347 = vmul.f32 %v1329, %v1345
    %s1348 = scalar_lea.vmem %s0, 24
    %v1349 = vld [vmem:[%s1348] sm:$0xf]
    %1351 = vset.pattern.permute.xlu0 0
    %1352 = vperm.xlu0 %1351, %v1349
    %v1353 = vpop.permute.xlu0 %1352
    %v1355 = vmul.f32 %v1353, %v76
    %v1356 = vsel %vm85, %v1244, 0
    %1358 = vmatprep.subr.mxu0 0.0
    %1359 = vmatpush1.msra.mxu0 %v45
    %1360 = vmatprep.subr.mxu0 0.0
    %1361 = vmatpush1.msra.mxu0 %v46
    %1362 = vmatprep.subr.mxu0 0.0
    %1363 = vmatpush1.msra.mxu0 %v47
    %1364 = vmatprep.subr.mxu0 0.0
    %1365 = vmatpush1.msra.mxu0 %v48
    %1366 = vmatprep.subr.mxu0 0.0
    %1367 = vmatpush1.msra.mxu0 0.0
    %1368 = vmatprep.subr.mxu0 0.0
    %1369 = vmatpush1.msra.mxu0 0.0
    %1370 = vmatprep.subr.mxu0 0.0
    %1371 = vmatpush1.msra.mxu0 0.0
    %1372 = vmatprep.subr.mxu0 0.0
    %1373 = vmatpush1.msra.mxu0 0.0
    %1374 = vmatprep.subr.mxu0 0.0
    %1375 = vmatpush1.msra.mxu0 0.0
    %1376 = vmatprep.subr.mxu0 0.0
    %1377 = vmatpush1.msra.mxu0 0.0
    %1378 = vmatprep.subr.mxu0 0.0
    %1379 = vmatpush1.msra.mxu0 0.0
    %1380 = vmatprep.subr.mxu0 0.0
    %1381 = vmatpush1.msra.mxu0 0.0
    %1382 = vmatprep.subr.mxu0 0.0
    %1383 = vmatpush1.msra.mxu0 0.0
    %1384 = vmatprep.subr.mxu0 0.0
    %1385 = vmatpush1.msra.mxu0 0.0
    %1386 = vmatprep.subr.mxu0 0.0
    %1387 = vmatpush1.msra.mxu0 0.0
    %1388 = vmatprep.subr.mxu0 0.0
    %1389 = vmatpush1.msra.mxu0 0.0
    %1390 = vmatprep.subr.mxu0 0.0
    %1391 = vmatpush1.msra.mxu0 0.0
    %1392 = vmatprep.subr.mxu0 0.0
    %1393 = vmatpush1.msra.mxu0 0.0
    %1394 = vmatprep.subr.mxu0 0.0
    %1395 = vmatpush1.msra.mxu0 0.0
    %1396 = vmatprep.subr.mxu0 0.0
    %1397 = vmatpush1.msra.mxu0 0.0
    %1398 = vmatprep.subr.mxu0 0.0
    %1399 = vmatpush1.msra.mxu0 0.0
    %1400 = vmatprep.subr.mxu0 0.0
    %1401 = vmatpush1.msra.mxu0 0.0
    %1402 = vmatprep.subr.mxu0 0.0
    %1403 = vmatpush1.msra.mxu0 0.0
    %1404 = vmatprep.subr.mxu0 0.0
    %1405 = vmatpush1.msra.mxu0 0.0
    %1406 = vmatprep.subr.mxu0 0.0
    %1407 = vmatpush1.msra.mxu0 0.0
    %1408 = vmatprep.subr.mxu0 0.0
    %1409 = vmatpush1.msra.mxu0 0.0
    %1410 = vmatprep.subr.mxu0 0.0
    %1411 = vmatpush1.msra.mxu0 0.0
    %1412 = vmatprep.subr.mxu0 0.0
    %1413 = vmatpush1.msra.mxu0 0.0
    %1414 = vmatprep.subr.mxu0 0.0
    %1415 = vmatpush1.msra.mxu0 0.0
    %1416 = vmatprep.subr.mxu0 0.0
    %1417 = vmatpush1.msra.mxu0 0.0
    %1418 = vmatprep.subr.mxu0 0.0
    %1419 = vmatpush1.msra.mxu0 0.0
    %1420 = vmatprep.subr.mxu0 0.0
    %1421 = vmatpush1.msra.mxu0 0.0
    %1422 = vmatprep.mubr.f32.mxu0 0.0
    %1423 = vmatmul.mubr.f32.gmra.mrb[0].mxu0 %v1356
    %v1424 = vpop.f32.mrb[0].mxu0
    %v1425 = vadd.f32 0.0, %v1424
    %v1426 = vpop.f32.mrb[0].mxu0
    %1427 = vdwg.mxu0
    %v1428 = vadd.f32 %v1355, %v1425
    %v1429 = vadd.f32 %v1428, %v62
    %v1430 = vxor.u32 %v1429, 2147483648
    %v1431 = vmul.f32 %v1430, 1.442695
    %v1432 = vpow.pop %v1431
    %v1433 = vadd.f32 %v1432, 1.0
    %v1434 = vrcp.pop %v1433
    %v1435 = vmul.f32 1.0, %v1434
    %v1436 = vtanh.pop %v1429
    %v1437 = vmul.f32 %v1435, %v1235
    %1439 = vrot.lane.b32.xlu0 %v1436, 32
    %v1440 = vpop.permute.xlu0 %1439
    %v1442 = vmul.f32 %v1435, %v1440
    %1444 = vrot.lane.b32.xlu0 %v1442, 32
    %v1445 = vpop.permute.xlu0 %1444
    %v1447 = vadd.f32 %v1437, %v1445
    %v1448 = vtanh.pop %v1447
    %1450 = vrot.lane.b32.xlu0 %v1448, 32
    %v1451 = vpop.permute.xlu0 %1450
    %v1453 = vmul.f32 %v1435, %v1451
    %1455 = vrot.lane.b32.xlu0 %v1453, 64
    %v1456 = vpop.permute.xlu0 %1455
    %1459 = vrot.lane.b32.xlu0 %v1347, 96
    %v1460 = vpop.permute.xlu0 %1459
    %v1462 = vsel %vm85, %v1456, %v1460
    %v1464 = vsel %vm190, %v1462, 0
    %1466 = vmatprep.subr.mxu0 0.0
    %1467 = vmatpush1.msra.mxu0 %v49
    %1468 = vmatprep.subr.mxu0 0.0
    %1469 = vmatpush1.msra.mxu0 %v50
    %1470 = vmatprep.subr.mxu0 0.0
    %1471 = vmatpush1.msra.mxu0 %v51
    %1472 = vmatprep.subr.mxu0 0.0
    %1473 = vmatpush1.msra.mxu0 %v52
    %1474 = vmatprep.subr.mxu0 0.0
    %1475 = vmatpush1.msra.mxu0 %v53
    %1476 = vmatprep.subr.mxu0 0.0
    %1477 = vmatpush1.msra.mxu0 %v54
    %1478 = vmatprep.subr.mxu0 0.0
    %1479 = vmatpush1.msra.mxu0 %v55
    %1480 = vmatprep.subr.mxu0 0.0
    %1481 = vmatpush1.msra.mxu0 %v56
    %1482 = vmatprep.subr.mxu0 0.0
    %1483 = vmatpush1.msra.mxu0 0.0
    %1484 = vmatprep.subr.mxu0 0.0
    %1485 = vmatpush1.msra.mxu0 0.0
    %1486 = vmatprep.subr.mxu0 0.0
    %1487 = vmatpush1.msra.mxu0 0.0
    %1488 = vmatprep.subr.mxu0 0.0
    %1489 = vmatpush1.msra.mxu0 0.0
    %1490 = vmatprep.subr.mxu0 0.0
    %1491 = vmatpush1.msra.mxu0 0.0
    %1492 = vmatprep.subr.mxu0 0.0
    %1493 = vmatpush1.msra.mxu0 0.0
    %1494 = vmatprep.subr.mxu0 0.0
    %1495 = vmatpush1.msra.mxu0 0.0
    %1496 = vmatprep.subr.mxu0 0.0
    %1497 = vmatpush1.msra.mxu0 0.0
    %1498 = vmatprep.subr.mxu0 0.0
    %1499 = vmatpush1.msra.mxu0 0.0
    %1500 = vmatprep.subr.mxu0 0.0
    %1501 = vmatpush1.msra.mxu0 0.0
    %1502 = vmatprep.subr.mxu0 0.0
    %1503 = vmatpush1.msra.mxu0 0.0
    %1504 = vmatprep.subr.mxu0 0.0
    %1505 = vmatpush1.msra.mxu0 0.0
    %1506 = vmatprep.subr.mxu0 0.0
    %1507 = vmatpush1.msra.mxu0 0.0
    %1508 = vmatprep.subr.mxu0 0.0
    %1509 = vmatpush1.msra.mxu0 0.0
    %1510 = vmatprep.subr.mxu0 0.0
    %1511 = vmatpush1.msra.mxu0 0.0
    %1512 = vmatprep.subr.mxu0 0.0
    %1513 = vmatpush1.msra.mxu0 0.0
    %1514 = vmatprep.subr.mxu0 0.0
    %1515 = vmatpush1.msra.mxu0 0.0
    %1516 = vmatprep.subr.mxu0 0.0
    %1517 = vmatpush1.msra.mxu0 0.0
    %1518 = vmatprep.subr.mxu0 0.0
    %1519 = vmatpush1.msra.mxu0 0.0
    %1520 = vmatprep.subr.mxu0 0.0
    %1521 = vmatpush1.msra.mxu0 0.0
    %1522 = vmatprep.subr.mxu0 0.0
    %1523 = vmatpush1.msra.mxu0 0.0
    %1524 = vmatprep.subr.mxu0 0.0
    %1525 = vmatpush1.msra.mxu0 0.0
    %1526 = vmatprep.subr.mxu0 0.0
    %1527 = vmatpush1.msra.mxu0 0.0
    %1528 = vmatprep.subr.mxu0 0.0
    %1529 = vmatpush1.msra.mxu0 0.0
    %1530 = vmatprep.mubr.f32.mxu0 0.0
    %1531 = vmatmul.mubr.f32.gmra.mrb[0].mxu0 %v1464
    %v1532 = vpop.f32.mrb[0].mxu0
    %v1533 = vadd.f32 %v69, %v1532
    %v1534 = vpop.f32.mrb[0].mxu0
    %1535 = vdwg.mxu0
    %v1536 = vxor.u32 %v1533, 2147483648
    %v1537 = vmul.f32 %v1536, 1.442695
    %v1538 = vpow.pop %v1537
    %v1539 = vadd.f32 %v1538, 1.0
    %v1540 = vrcp.pop %v1539
    %v1541 = vmul.f32 1.0, %v1540
    %v1542 = vtanh.pop %v1533
    %v1543 = vmul.f32 %v1541, %v1341
    %1545 = vrot.lane.b32.xlu0 %v1542, 32
    %v1546 = vpop.permute.xlu0 %1545
    %v1548 = vmul.f32 %v1541, %v1546
    %1550 = vrot.lane.b32.xlu0 %v1548, 32
    %v1551 = vpop.permute.xlu0 %1550
    %v1553 = vadd.f32 %v1543, %v1551
    %v1554 = vtanh.pop %v1553
    %1556 = vrot.lane.b32.xlu0 %v1554, 32
    %v1557 = vpop.permute.xlu0 %1556
    %v1559 = vmul.f32 %v1541, %v1557
    %s1560 = scalar_lea.vmem %s0, 28
    %v1561 = vld [vmem:[%s1560] sm:$0xf]
    %1563 = vset.pattern.permute.xlu0 0
    %1564 = vperm.xlu0 %1563, %v1561
    %v1565 = vpop.permute.xlu0 %1564
    %v1567 = vmul.f32 %v1565, %v76
    %v1568 = vsel %vm85, %v1456, 0
    %1570 = vmatprep.subr.mxu0 0.0
    %1571 = vmatpush1.msra.mxu0 %v45
    %1572 = vmatprep.subr.mxu0 0.0
    %1573 = vmatpush1.msra.mxu0 %v46
    %1574 = vmatprep.subr.mxu0 0.0
    %1575 = vmatpush1.msra.mxu0 %v47
    %1576 = vmatprep.subr.mxu0 0.0
    %1577 = vmatpush1.msra.mxu0 %v48
    %1578 = vmatprep.subr.mxu0 0.0
    %1579 = vmatpush1.msra.mxu0 0.0
    %1580 = vmatprep.subr.mxu0 0.0
    %1581 = vmatpush1.msra.mxu0 0.0
    %1582 = vmatprep.subr.mxu0 0.0
    %1583 = vmatpush1.msra.mxu0 0.0
    %1584 = vmatprep.subr.mxu0 0.0
    %1585 = vmatpush1.msra.mxu0 0.0
    %1586 = vmatprep.subr.mxu0 0.0
    %1587 = vmatpush1.msra.mxu0 0.0
    %1588 = vmatprep.subr.mxu0 0.0
    %1589 = vmatpush1.msra.mxu0 0.0
    %1590 = vmatprep.subr.mxu0 0.0
    %1591 = vmatpush1.msra.mxu0 0.0
    %1592 = vmatprep.subr.mxu0 0.0
    %1593 = vmatpush1.msra.mxu0 0.0
    %1594 = vmatprep.subr.mxu0 0.0
    %1595 = vmatpush1.msra.mxu0 0.0
    %1596 = vmatprep.subr.mxu0 0.0
    %1597 = vmatpush1.msra.mxu0 0.0
    %1598 = vmatprep.subr.mxu0 0.0
    %1599 = vmatpush1.msra.mxu0 0.0
    %1600 = vmatprep.subr.mxu0 0.0
    %1601 = vmatpush1.msra.mxu0 0.0
    %1602 = vmatprep.subr.mxu0 0.0
    %1603 = vmatpush1.msra.mxu0 0.0
    %1604 = vmatprep.subr.mxu0 0.0
    %1605 = vmatpush1.msra.mxu0 0.0
    %1606 = vmatprep.subr.mxu0 0.0
    %1607 = vmatpush1.msra.mxu0 0.0
    %1608 = vmatprep.subr.mxu0 0.0
    %1609 = vmatpush1.msra.mxu0 0.0
    %1610 = vmatprep.subr.mxu0 0.0
    %1611 = vmatpush1.msra.mxu0 0.0
    %1612 = vmatprep.subr.mxu0 0.0
    %1613 = vmatpush1.msra.mxu0 0.0
    %1614 = vmatprep.subr.mxu0 0.0
    %1615 = vmatpush1.msra.mxu0 0.0
    %1616 = vmatprep.subr.mxu0 0.0
    %1617 = vmatpush1.msra.mxu0 0.0
    %1618 = vmatprep.subr.mxu0 0.0
    %1619 = vmatpush1.msra.mxu0 0.0
    %1620 = vmatprep.subr.mxu0 0.0
    %1621 = vmatpush1.msra.mxu0 0.0
    %1622 = vmatprep.subr.mxu0 0.0
    %1623 = vmatpush1.msra.mxu0 0.0
    %1624 = vmatprep.subr.mxu0 0.0
    %1625 = vmatpush1.msra.mxu0 0.0
    %1626 = vmatprep.subr.mxu0 0.0
    %1627 = vmatpush1.msra.mxu0 0.0
    %1628 = vmatprep.subr.mxu0 0.0
    %1629 = vmatpush1.msra.mxu0 0.0
    %1630 = vmatprep.subr.mxu0 0.0
    %1631 = vmatpush1.msra.mxu0 0.0
    %1632 = vmatprep.subr.mxu0 0.0
    %1633 = vmatpush1.msra.mxu0 0.0
    %1634 = vmatprep.mubr.f32.mxu0 0.0
    %1635 = vmatmul.mubr.f32.gmra.mrb[0].mxu0 %v1568
    %v1636 = vpop.f32.mrb[0].mxu0
    %v1637 = vadd.f32 0.0, %v1636
    %v1638 = vpop.f32.mrb[0].mxu0
    %1639 = vdwg.mxu0
    %v1640 = vadd.f32 %v1567, %v1637
    %v1641 = vadd.f32 %v1640, %v62
    %v1642 = vxor.u32 %v1641, 2147483648
    %v1643 = vmul.f32 %v1642, 1.442695
    %v1644 = vpow.pop %v1643
    %v1645 = vadd.f32 %v1644, 1.0
    %v1646 = vrcp.pop %v1645
    %v1647 = vmul.f32 1.0, %v1646
    %v1648 = vtanh.pop %v1641
    %v1649 = vmul.f32 %v1647, %v1447
    %1651 = vrot.lane.b32.xlu0 %v1648, 32
    %v1652 = vpop.permute.xlu0 %1651
    %v1654 = vmul.f32 %v1647, %v1652
    %1656 = vrot.lane.b32.xlu0 %v1654, 32
    %v1657 = vpop.permute.xlu0 %1656
    %v1659 = vadd.f32 %v1649, %v1657
    %v1660 = vtanh.pop %v1659
    %1662 = vrot.lane.b32.xlu0 %v1660, 32
    %v1663 = vpop.permute.xlu0 %1662
    %v1665 = vmul.f32 %v1647, %v1663
    %1667 = vrot.lane.b32.xlu0 %v1665, 64
    %v1668 = vpop.permute.xlu0 %1667
    %1671 = vrot.lane.b32.xlu0 %v1559, 96
    %v1672 = vpop.permute.xlu0 %1671
    %v1674 = vsel %vm85, %v1668, %v1672
    %v1676 = vsel %vm190, %v1674, 0
    %1678 = vmatprep.subr.mxu0 0.0
    %1679 = vmatpush1.msra.mxu0 %v49
    %1680 = vmatprep.subr.mxu0 0.0
    %1681 = vmatpush1.msra.mxu0 %v50
    %1682 = vmatprep.subr.mxu0 0.0
    %1683 = vmatpush1.msra.mxu0 %v51
    %1684 = vmatprep.subr.mxu0 0.0
    %1685 = vmatpush1.msra.mxu0 %v52
    %1686 = vmatprep.subr.mxu0 0.0
    %1687 = vmatpush1.msra.mxu0 %v53
    %1688 = vmatprep.subr.mxu0 0.0
    %1689 = vmatpush1.msra.mxu0 %v54
    %1690 = vmatprep.subr.mxu0 0.0
    %1691 = vmatpush1.msra.mxu0 %v55
    %1692 = vmatprep.subr.mxu0 0.0
    %1693 = vmatpush1.msra.mxu0 %v56
    %1694 = vmatprep.subr.mxu0 0.0
    %1695 = vmatpush1.msra.mxu0 0.0
    %1696 = vmatprep.subr.mxu0 0.0
    %1697 = vmatpush1.msra.mxu0 0.0
    %1698 = vmatprep.subr.mxu0 0.0
    %1699 = vmatpush1.msra.mxu0 0.0
    %1700 = vmatprep.subr.mxu0 0.0
    %1701 = vmatpush1.msra.mxu0 0.0
    %1702 = vmatprep.subr.mxu0 0.0
    %1703 = vmatpush1.msra.mxu0 0.0
    %1704 = vmatprep.subr.mxu0 0.0
    %1705 = vmatpush1.msra.mxu0 0.0
    %1706 = vmatprep.subr.mxu0 0.0
    %1707 = vmatpush1.msra.mxu0 0.0
    %1708 = vmatprep.subr.mxu0 0.0
    %1709 = vmatpush1.msra.mxu0 0.0
    %1710 = vmatprep.subr.mxu0 0.0
    %1711 = vmatpush1.msra.mxu0 0.0
    %1712 = vmatprep.subr.mxu0 0.0
    %1713 = vmatpush1.msra.mxu0 0.0
    %1714 = vmatprep.subr.mxu0 0.0
    %1715 = vmatpush1.msra.mxu0 0.0
    %1716 = vmatprep.subr.mxu0 0.0
    %1717 = vmatpush1.msra.mxu0 0.0
    %1718 = vmatprep.subr.mxu0 0.0
    %1719 = vmatpush1.msra.mxu0 0.0
    %1720 = vmatprep.subr.mxu0 0.0
    %1721 = vmatpush1.msra.mxu0 0.0
    %1722 = vmatprep.subr.mxu0 0.0
    %1723 = vmatpush1.msra.mxu0 0.0
    %1724 = vmatprep.subr.mxu0 0.0
    %1725 = vmatpush1.msra.mxu0 0.0
    %1726 = vmatprep.subr.mxu0 0.0
    %1727 = vmatpush1.msra.mxu0 0.0
    %1728 = vmatprep.subr.mxu0 0.0
    %1729 = vmatpush1.msra.mxu0 0.0
    %1730 = vmatprep.subr.mxu0 0.0
    %1731 = vmatpush1.msra.mxu0 0.0
    %1732 = vmatprep.subr.mxu0 0.0
    %1733 = vmatpush1.msra.mxu0 0.0
    %1734 = vmatprep.subr.mxu0 0.0
    %1735 = vmatpush1.msra.mxu0 0.0
    %1736 = vmatprep.subr.mxu0 0.0
    %1737 = vmatpush1.msra.mxu0 0.0
    %1738 = vmatprep.subr.mxu0 0.0
    %1739 = vmatpush1.msra.mxu0 0.0
    %1740 = vmatprep.subr.mxu0 0.0
    %1741 = vmatpush1.msra.mxu0 0.0
    %1742 = vmatprep.mubr.f32.mxu0 0.0
    %1743 = vmatmul.mubr.f32.gmra.mrb[0].mxu0 %v1676
    %v1744 = vpop.f32.mrb[0].mxu0
    %v1745 = vadd.f32 %v69, %v1744
    %v1746 = vpop.f32.mrb[0].mxu0
    %1747 = vdwg.mxu0
    %v1748 = vxor.u32 %v1745, 2147483648
    %v1749 = vmul.f32 %v1748, 1.442695
    %v1750 = vpow.pop %v1749
    %v1751 = vadd.f32 %v1750, 1.0
    %v1752 = vrcp.pop %v1751
    %v1753 = vmul.f32 1.0, %v1752
    %v1754 = vtanh.pop %v1745
    %v1755 = vmul.f32 %v1753, %v1553
    %1757 = vrot.lane.b32.xlu0 %v1754, 32
    %v1758 = vpop.permute.xlu0 %1757
    %v1760 = vmul.f32 %v1753, %v1758
    %1762 = vrot.lane.b32.xlu0 %v1760, 32
    %v1763 = vpop.permute.xlu0 %1762
    %v1765 = vadd.f32 %v1755, %v1763
    %v1766 = vtanh.pop %v1765
    %1768 = vrot.lane.b32.xlu0 %v1766, 32
    %v1769 = vpop.permute.xlu0 %1768
    %v1771 = vmul.f32 %v1753, %v1769
    %v1772 = vld [vmem:[%s6] sm:$0xff]
    %v1773 = vld [vmem:[%s6 + $0x8] sm:$0xff]
    %v1774 = vld [vmem:[%s6 + $0x10] sm:$0xff]
    %v1775 = vld [vmem:[%s6 + $0x18] sm:$0xff]
    %v1776 = vld [vmem:[#allocation2] sm:$0x1]
    %v1778 = vlaneseq
    %v1779 = vshrl.u32 %v1778, 7
    %v1780 = vsub.s32 0, %v1779
    %v1781 = vrot.slane %v1776, %v1780
    %1784 = vrot.lane.b32.xlu0 %v1771, 64
    %v1785 = vpop.permute.xlu0 %1784
    %v1786 = vsel %vm85, %v1785, 0
    %1788 = vmatprep.subr.mxu0 0.0
    %1789 = vmatpush1.msra.mxu0 %v1772
    %1790 = vmatprep.subr.mxu0 0.0
    %1791 = vmatpush1.msra.mxu0 %v1773
    %1792 = vmatprep.subr.mxu0 0.0
    %1793 = vmatpush1.msra.mxu0 %v1774
    %1794 = vmatprep.subr.mxu0 0.0
    %1795 = vmatpush1.msra.mxu0 %v1775
    %1796 = vmatprep.subr.mxu0 0.0
    %1797 = vmatpush1.msra.mxu0 0.0
    %1798 = vmatprep.subr.mxu0 0.0
    %1799 = vmatpush1.msra.mxu0 0.0
    %1800 = vmatprep.subr.mxu0 0.0
    %1801 = vmatpush1.msra.mxu0 0.0
    %1802 = vmatprep.subr.mxu0 0.0
    %1803 = vmatpush1.msra.mxu0 0.0
    %1804 = vmatprep.subr.mxu0 0.0
    %1805 = vmatpush1.msra.mxu0 0.0
    %1806 = vmatprep.subr.mxu0 0.0
    %1807 = vmatpush1.msra.mxu0 0.0
    %1808 = vmatprep.subr.mxu0 0.0
    %1809 = vmatpush1.msra.mxu0 0.0
    %1810 = vmatprep.subr.mxu0 0.0
    %1811 = vmatpush1.msra.mxu0 0.0
    %1812 = vmatprep.subr.mxu0 0.0
    %1813 = vmatpush1.msra.mxu0 0.0
    %1814 = vmatprep.subr.mxu0 0.0
    %1815 = vmatpush1.msra.mxu0 0.0
    %1816 = vmatprep.subr.mxu0 0.0
    %1817 = vmatpush1.msra.mxu0 0.0
    %1818 = vmatprep.subr.mxu0 0.0
    %1819 = vmatpush1.msra.mxu0 0.0
    %1820 = vmatprep.subr.mxu0 0.0
    %1821 = vmatpush1.msra.mxu0 0.0
    %1822 = vmatprep.subr.mxu0 0.0
    %1823 = vmatpush1.msra.mxu0 0.0
    %1824 = vmatprep.subr.mxu0 0.0
    %1825 = vmatpush1.msra.mxu0 0.0
    %1826 = vmatprep.subr.mxu0 0.0
    %1827 = vmatpush1.msra.mxu0 0.0
    %1828 = vmatprep.subr.mxu0 0.0
    %1829 = vmatpush1.msra.mxu0 0.0
    %1830 = vmatprep.subr.mxu0 0.0
    %1831 = vmatpush1.msra.mxu0 0.0
    %1832 = vmatprep.subr.mxu0 0.0
    %1833 = vmatpush1.msra.mxu0 0.0
    %1834 = vmatprep.subr.mxu0 0.0
    %1835 = vmatpush1.msra.mxu0 0.0
    %1836 = vmatprep.subr.mxu0 0.0
    %1837 = vmatpush1.msra.mxu0 0.0
    %1838 = vmatprep.subr.mxu0 0.0
    %1839 = vmatpush1.msra.mxu0 0.0
    %1840 = vmatprep.subr.mxu0 0.0
    %1841 = vmatpush1.msra.mxu0 0.0
    %1842 = vmatprep.subr.mxu0 0.0
    %1843 = vmatpush1.msra.mxu0 0.0
    %1844 = vmatprep.subr.mxu0 0.0
    %1845 = vmatpush1.msra.mxu0 0.0
    %1846 = vmatprep.subr.mxu0 0.0
    %1847 = vmatpush1.msra.mxu0 0.0
    %1848 = vmatprep.subr.mxu0 0.0
    %1849 = vmatpush1.msra.mxu0 0.0
    %1850 = vmatprep.subr.mxu0 0.0
    %1851 = vmatpush1.msra.mxu0 0.0
    %1852 = vmatprep.mubr.f32.mxu0 0.0
    %1853 = vmatmul.mubr.f32.gmra.mrb[0].mxu0 %v1786
    %v1854 = vpop.f32.mrb[0].mxu0
    %v1855 = vadd.f32 %v1781, %v1854
    %v1856 = vpop.f32.mrb[0].mxu0
    %1857 = vdwg.mxu0
    %vm1858 = vcmask 3072
    %1859 = vst.msk [vmem:[%s8] sm:$0xf] %vm1858, %v1855
    // Predicated region
    $region38: #{tpu_custom_call.1} parent=1 // pred_check
      _
    $region39: #{tpu_custom_call.1} parent=1 // pred_check_branch
      %1861 = sbr.rel (0) target = $region41
    $region40: #{tpu_custom_call.1} parent=1 // pred_region
      _
    $region41: #{tpu_custom_call.1} parent=1 // pred_fallthru
      _
    // Predicated region
    $region42: #{tpu_custom_call.1} parent=1 // pred_check
      _
    $region43: #{tpu_custom_call.1} parent=1 // pred_check_branch
      %1863 = sbr.rel (0) target = $region45
    $region44: #{tpu_custom_call.1} parent=1 // pred_region
      _
    $region45: #{tpu_custom_call.1} parent=1 // pred_fallthru
      _
    %1864 = vsyncpa [#allocation4], 1

</llo_original>
